<compile_context>
chip_gen: v7x
topology: tpu7x:2x2x1
jax: 0.10.0
libtpu: 0.0.40
codegen_flags: <defaults>
</compile_context>

<pallas_src>
import numpy as np
import jax
import jax.numpy as jnp
from jax.experimental import pallas as pl
from jax.experimental.pallas import tpu as pltpu


# ---------------------------------------------------------------------------
# Pallas kernel (single invocation = whole Stack, all blocks unrolled)
# ---------------------------------------------------------------------------
def _elu(x):
    # inf-safe ELU: exp is only evaluated on a clamped argument.
    return jnp.where(x > 0, x, jnp.exp(jnp.minimum(x, 0.0)) - 1.0)


def make_stack_kernel(*, num_blocks: int, layers: int, use_exog: bool,
                      forecast_size: int):
    nh = layers - 1
    F = forecast_size

    def kernel(*refs):
        it = iter(refs)
        x_ref = next(it)                                   # (TB, L)
        if use_exog:
            exog_ref = next(it)                            # (TB, E)
            gw1, gb1, gw2, gb2, gw3, gb3, gg, gbt = (next(it) for _ in range(8))
        w0x = next(it)                                     # (N, L, H)
        if use_exog:
            w0e = next(it)                                 # (N, E, H)
        b0 = next(it)                                      # (N, 1, H)
        if nh > 0:
            wh = next(it)                                  # (N, nh, H, H)
            bh = next(it)                                  # (N, nh, 1, H)
        wback = next(it)                                   # (N, H, L) folded basis
        bback = next(it)                                   # (N, 1, L)
        wfore = next(it)                                   # (N, H, F) folded basis
        bfore = next(it)                                   # (N, 1, F)
        out_ref = next(it)                                 # (TB, L + F)

        x = x_ref[...]

        # ------ block-independent GRN precompute, batched over blocks -------
        # (off the serial residual chain; fills MXU M with num_blocks*B rows)
        if use_exog:
            e = exog_ref[...]                              # (TB, E)
            eb = jnp.broadcast_to(e[None], (num_blocks,) + e.shape)   # (N,TB,E)
            h = jnp.einsum('nbe,neh->nbh', eb, gw1[...],
                           preferred_element_type=jnp.float32) + gb1[...]
            h = _elu(h)
            h = jnp.einsum('nbh,nhk->nbk', h, gw2[...],
                           preferred_element_type=jnp.float32) + gb2[...]
            h = _elu(h)
            h = jnp.einsum('nbh,nhe->nbe', h, gw3[...],
                           preferred_element_type=jnp.float32) + gb3[...]
            z = h + eb                                     # residual connection
            mu = jnp.mean(z, axis=-1, keepdims=True)
            var = jnp.mean((z - mu) ** 2, axis=-1, keepdims=True)
            pe = (z - mu) * jax.lax.rsqrt(var + 1e-5) * gg[...] + gbt[...]
            grn = jnp.einsum('nbe,neh->nbh', pe, w0e[...],
                             preferred_element_type=jnp.float32)       # (N,TB,H)

        # ------ serial block loop: residual / forecast carried as values ----
        residual = x
        forecast = jnp.zeros((x.shape[0], F), jnp.float32)
        for n in range(num_blocks):                        # static unroll
            acc = jnp.dot(residual, w0x[n], preferred_element_type=jnp.float32)
            if use_exog:
                acc = acc + grn[n]
            h = jnp.maximum(acc + b0[n], 0.0)
            for l in range(nh):                            # static unroll
                h = jnp.maximum(
                    jnp.dot(h, wh[n, l], preferred_element_type=jnp.float32)
                    + bh[n, l], 0.0)
            # folded tail as two small matmuls (no lane-offset slices)
            back = jnp.dot(h, wback[n], preferred_element_type=jnp.float32) + bback[n]
            fore = jnp.dot(h, wfore[n], preferred_element_type=jnp.float32) + bfore[n]
            residual = residual - back
            forecast = forecast + fore

        # single lane-dense writeback
        out_ref[...] = jnp.concatenate([residual, forecast], axis=-1)

    return kernel


def stack_forward(x, exog, packed, *, layers, forecast_size):
    """Run the whole Stack in a single pallas_call invocation."""
    use_exog = 'gw1' in packed
    B, L = x.shape
    F = forecast_size
    H = packed['w0x'].shape[2]
    N = packed['w0x'].shape[0]
    nh = layers - 1
    E = exog.shape[1] if use_exog else 0

    # Batch-tile grid axis ("parallel") so a second TensorCore (v7x) can be
    # used once B is large enough; degenerates to a single step otherwise.
    if B >= 16 and B % 16 == 0:
        TB = B // 2
        while TB > 512 and TB % 16 == 0:
            TB //= 2
    else:
        TB = B
    grid = (B // TB,)

    args = [x]
    in_specs = [pl.BlockSpec((TB, L), lambda i: (i, 0))]

    def add_full(name):
        arr = packed[name]
        args.append(arr)
        nd = arr.ndim
        in_specs.append(pl.BlockSpec(arr.shape, lambda i, _nd=nd: (0,) * _nd))

    if use_exog:
        args.append(exog)
        in_specs.append(pl.BlockSpec((TB, E), lambda i: (i, 0)))
        for nm in ('gw1', 'gb1', 'gw2', 'gb2', 'gw3', 'gb3', 'gg', 'gbt'):
            add_full(nm)
    add_full('w0x')
    if use_exog:
        add_full('w0e')
    add_full('b0')
    if nh > 0:
        add_full('wh')
        add_full('bh')
    for nm in ('wback', 'bback', 'wfore', 'bfore'):
        add_full(nm)

    # Advisory cost estimate so XLA schedules around the fused call sensibly.
    param_bytes = int(sum(int(np.prod(v.shape)) * 4 for v in packed.values()))
    per_block = 2 * B * L * H + nh * 2 * B * H * H + 2 * B * H * (F + L)
    transcend = 0
    if use_exog:
        per_block += 2 * B * E * H + 2 * B * H * H + 2 * B * H * E + 2 * B * E * H
        transcend = N * 2 * B * H
    cost = pl.CostEstimate(
        flops=int(N * per_block),
        transcendentals=int(transcend),
        bytes_accessed=int(param_bytes + 4 * (B * L + B * E + B * (L + F))))

    out = pl.pallas_call(
        make_stack_kernel(num_blocks=N, layers=layers, use_exog=use_exog,
                          forecast_size=F),
        grid=grid,
        in_specs=in_specs,
        out_specs=pl.BlockSpec((TB, L + F), lambda i: (i, 0)),
        out_shape=jax.ShapeDtypeStruct((B, L + F), jnp.float32),
        compiler_params=pltpu.CompilerParams(
            dimension_semantics=("parallel",)),
        cost_estimate=cost,
    )(*args)

    return out[:, :L], out[:, L:]


# ---------------------------------------------------------------------------
# Parameter construction (deterministic, shapes from Stack.__init__)
# ---------------------------------------------------------------------------
def _linear(key, fan_in, fan_out):
    kw, kb = jax.random.split(key)
    bound = 1.0 / np.sqrt(fan_in)
    W = jax.random.uniform(kw, (fan_in, fan_out), jnp.float32, -bound, bound)
    b = jax.random.uniform(kb, (1, fan_out), jnp.float32, -bound, bound)
    return W, b


def _trend_basis(degree, size):
    t = np.linspace(0.0, 1.0, size)
    return np.stack([t ** i for i in range(degree + 1)], axis=0).astype(np.float32)


def _seasonality_basis(harmonics, size):
    t = np.linspace(0.0, 2.0 * np.pi, size)
    rows = []
    for i in range(1, harmonics + 1):
        rows.append(np.sin(i * t))
        rows.append(np.cos(i * t))
    return np.stack(rows, axis=0).astype(np.float32)


def init_block(key, L, E, H, layers, theta_size, cut, fb_np, bb_np):
    nh = layers - 1
    keys = jax.random.split(key, 8 + max(nh, 0))
    p = {}
    if E > 0:  # GRN on exog
        p['gw1'], p['gb1'] = _linear(keys[0], E, H)
        p['gw2'], p['gb2'] = _linear(keys[1], H, H)
        p['gw3'], p['gb3'] = _linear(keys[2], H, E)
        p['gg'] = jnp.ones((1, E), jnp.float32)     # LayerNorm gamma
        p['gbt'] = jnp.zeros((1, E), jnp.float32)   # LayerNorm beta
    W0, b0 = _linear(keys[3], L + E, H)             # Linear(input+exog, hidden)
    p['w0x'] = W0[:L]
    if E > 0:
        p['w0e'] = W0[L:]
    p['b0'] = b0
    if nh > 0:
        whs, bhs = [], []
        for i in range(nh):
            Wi, bi = _linear(keys[4 + i], H, H)
            whs.append(Wi)
            bhs.append(bi)
        p['wh'] = jnp.stack(whs, axis=0)            # (nh, H, H)
        p['bh'] = jnp.stack(bhs, axis=0)            # (nh, 1, H)
    Wt, bt = _linear(keys[-1], H, theta_size)       # fc_theta
    p['wt'], p['bt'] = Wt, bt
    p['fb'] = jnp.asarray(fb_np)                    # (cut, F)
    p['bb'] = jnp.asarray(bb_np)                    # (theta_size - cut, L)
    p['cut'] = cut
    return p


def init_stack(key, input_size, forecast_size, exog_size, stack_type, num_blocks,
               hidden_units, layers, degree=None, harmonics=None):
    if stack_type == 'trend':
        cut = degree + 1
        theta_size = 2 * cut
        fb = _trend_basis(degree, forecast_size)
        bb = _trend_basis(degree, input_size)
    elif stack_type == 'seasonality':
        cut = 2 * harmonics
        theta_size = 4 * harmonics
        fb = _seasonality_basis(harmonics, forecast_size)
        bb = _seasonality_basis(harmonics, input_size)
    elif stack_type == 'generic':
        cut = forecast_size
        theta_size = input_size + forecast_size
        fb = np.eye(forecast_size, dtype=np.float32)
        bb = np.eye(input_size, dtype=np.float32)
    else:
        raise ValueError(stack_type)
    blocks = []
    for _ in range(num_blocks):
        key, sub = jax.random.split(key)
        blocks.append(init_block(sub, input_size, exog_size, hidden_units,
                                 layers, theta_size, cut, fb, bb))
    return blocks


def pack_stack(blocks):
    """Fold the basis into the theta weights (split tail) and stack per block."""
    folded = []
    for p in blocks:
        cut = p['cut']
        q = {k: p[k] for k in p if k not in ('wt', 'bt', 'fb', 'bb', 'cut')}
        q['wfore'] = p['wt'][:, :cut] @ p['fb']      # (H, F)
        q['bfore'] = p['bt'][:, :cut] @ p['fb']      # (1, F)
        q['wback'] = p['wt'][:, cut:] @ p['bb']      # (H, L)
        q['bback'] = p['bt'][:, cut:] @ p['bb']      # (1, L)
        folded.append(q)
    return {k: jnp.stack([q[k] for q in folded], axis=0) for k in folded[0]}


# ---------------------------------------------------------------------------
# Pure-JAX reference (unfused, unfolded)
# ---------------------------------------------------------------------------
def stack_reference(x, exog, blocks, layers, exog_size):
    use_exog = (exog_size > 0) and (exog is not None)
    residual = x
    forecast = jnp.zeros((x.shape[0], blocks[0]['fb'].shape[1]), jnp.float32)
    for p in blocks:
        acc = residual @ p['w0x']
        if use_exog:
            e = exog
            h = _elu(e @ p['gw1'] + p['gb1'])
            h = _elu(h @ p['gw2'] + p['gb2'])
            h = h @ p['gw3'] + p['gb3']
            z = h + e
            mu = jnp.mean(z, -1, keepdims=True)
            var = jnp.mean((z - mu) ** 2, -1, keepdims=True)
            pe = (z - mu) / jnp.sqrt(var + 1e-5) * p['gg'] + p['gbt']
            acc = acc + pe @ p['w0e']
        h = jnp.maximum(acc + p['b0'], 0.0)
        for l in range(layers - 1):
            h = jnp.maximum(h @ p['wh'][l] + p['bh'][l], 0.0)
        theta = h @ p['wt'] + p['bt']
        cut = p['cut']
        f = theta[:, :cut] @ p['fb']
        bkc = theta[:, cut:] @ p['bb']
        residual = residual - bkc
        forecast = forecast + f
    return residual, forecast


# ---------------------------------------------------------------------------
if __name__ == "__main__":
    B = 8
    input_size = 16
    forecast_size = 8
    hidden_units = 32
    layers = 2
    num_blocks = 3
    degree = 3
    harmonics = 2

    key = jax.random.PRNGKey(0)
    kx, ke, kp = jax.random.split(key, 3)
    x = jax.random.normal(kx, (B, input_size), jnp.float32)

    configs = [
        ('trend', 4),
        ('seasonality', 4),
        ('generic', 4),
        ('generic', 0),   # exercises the no-exog path
    ]
    for stack_type, exog_size in configs:
        exog = (jax.random.normal(ke, (B, exog_size), jnp.float32)
                if exog_size > 0 else None)
        kp, sub = jax.random.split(kp)
        blocks = init_stack(sub, input_size, forecast_size, exog_size, stack_type,
                            num_blocks, hidden_units, layers,
                            degree=degree, harmonics=harmonics)
        packed = pack_stack(blocks)

        residual, forecast = stack_forward(x, exog, packed, layers=layers,
                                           forecast_size=forecast_size)
        residual = jax.block_until_ready(residual)
        forecast = jax.block_until_ready(forecast)

        r_ref, f_ref = stack_reference(x, exog, blocks, layers, exog_size)
        r_ref = jax.block_until_ready(r_ref)
        f_ref = jax.block_until_ready(f_ref)

        assert forecast.shape == (B, forecast_size)
        assert residual.shape == (B, input_size)
        if not (jnp.allclose(forecast, f_ref, atol=1e-3, rtol=1e-3)
                and jnp.allclose(residual, r_ref, atol=1e-3, rtol=1e-3)):
            raise AssertionError(
                f"Pallas kernel mismatch for stack_type={stack_type}, exog={exog_size}")

    print("KERNEL_OK")
</pallas_src>

<mosaic_0001>
module attributes {stable_mosaic.version = 11 : i64} {
  func.func @kernel(%arg0: i32, %arg1: memref<8x16xf32, #tpu.memory_space<vmem>>, %arg2: memref<8x4xf32, #tpu.memory_space<vmem>>, %arg3: memref<3x4x32xf32, #tpu.memory_space<vmem>>, %arg4: memref<3x1x32xf32, #tpu.memory_space<vmem>>, %arg5: memref<3x32x32xf32, #tpu.memory_space<vmem>>, %arg6: memref<3x1x32xf32, #tpu.memory_space<vmem>>, %arg7: memref<3x32x4xf32, #tpu.memory_space<vmem>>, %arg8: memref<3x1x4xf32, #tpu.memory_space<vmem>>, %arg9: memref<3x1x4xf32, #tpu.memory_space<vmem>>, %arg10: memref<3x1x4xf32, #tpu.memory_space<vmem>>, %arg11: memref<3x16x32xf32, #tpu.memory_space<vmem>>, %arg12: memref<3x4x32xf32, #tpu.memory_space<vmem>>, %arg13: memref<3x1x32xf32, #tpu.memory_space<vmem>>, %arg14: memref<3x1x32x32xf32, #tpu.memory_space<vmem>>, %arg15: memref<3x1x1x32xf32, #tpu.memory_space<vmem>>, %arg16: memref<3x32x16xf32, #tpu.memory_space<vmem>>, %arg17: memref<3x1x16xf32, #tpu.memory_space<vmem>>, %arg18: memref<3x32x8xf32, #tpu.memory_space<vmem>>, %arg19: memref<3x1x8xf32, #tpu.memory_space<vmem>>, %arg20: memref<8x24xf32, #tpu.memory_space<vmem>>) attributes {dimension_semantics = [#tpu.dimension_semantics<parallel>], iteration_bounds = array<i64: 1>, scalar_prefetch = 0 : i64, scratch_operands = 0 : i64, tpu.core_type = #tpu.core_type<tc>, window_params = [{transform_indices = @transform_0, window_bounds = array<i64: 8, 16>}, {transform_indices = @transform_1, window_bounds = array<i64: 8, 4>}, {pipeline_mode = #tpu.pipeline_mode<synchronous>, transform_indices = @transform_2, window_bounds = array<i64: 3, 4, 32>}, {pipeline_mode = #tpu.pipeline_mode<synchronous>, transform_indices = @transform_3, window_bounds = array<i64: 3, 1, 32>}, {pipeline_mode = #tpu.pipeline_mode<synchronous>, transform_indices = @transform_4, window_bounds = array<i64: 3, 32, 32>}, {pipeline_mode = #tpu.pipeline_mode<synchronous>, transform_indices = @transform_5, window_bounds = array<i64: 3, 1, 32>}, {pipeline_mode = #tpu.pipeline_mode<synchronous>, transform_indices = @transform_6, window_bounds = array<i64: 3, 32, 4>}, {pipeline_mode = #tpu.pipeline_mode<synchronous>, transform_indices = @transform_7, window_bounds = array<i64: 3, 1, 4>}, {pipeline_mode = #tpu.pipeline_mode<synchronous>, transform_indices = @transform_8, window_bounds = array<i64: 3, 1, 4>}, {pipeline_mode = #tpu.pipeline_mode<synchronous>, transform_indices = @transform_9, window_bounds = array<i64: 3, 1, 4>}, {pipeline_mode = #tpu.pipeline_mode<synchronous>, transform_indices = @transform_10, window_bounds = array<i64: 3, 16, 32>}, {pipeline_mode = #tpu.pipeline_mode<synchronous>, transform_indices = @transform_11, window_bounds = array<i64: 3, 4, 32>}, {pipeline_mode = #tpu.pipeline_mode<synchronous>, transform_indices = @transform_12, window_bounds = array<i64: 3, 1, 32>}, {pipeline_mode = #tpu.pipeline_mode<synchronous>, transform_indices = @transform_13, window_bounds = array<i64: 3, 1, 32, 32>}, {pipeline_mode = #tpu.pipeline_mode<synchronous>, transform_indices = @transform_14, window_bounds = array<i64: 3, 1, 1, 32>}, {pipeline_mode = #tpu.pipeline_mode<synchronous>, transform_indices = @transform_15, window_bounds = array<i64: 3, 32, 16>}, {pipeline_mode = #tpu.pipeline_mode<synchronous>, transform_indices = @transform_16, window_bounds = array<i64: 3, 1, 16>}, {pipeline_mode = #tpu.pipeline_mode<synchronous>, transform_indices = @transform_17, window_bounds = array<i64: 3, 32, 8>}, {pipeline_mode = #tpu.pipeline_mode<synchronous>, transform_indices = @transform_18, window_bounds = array<i64: 3, 1, 8>}, {transform_indices = @transform_19, window_bounds = array<i64: 8, 24>}]} {
    %c0 = arith.constant 0 : index
    %c0_0 = arith.constant 0 : index
    %0 = vector.load %arg1[%c0, %c0_0] : memref<8x16xf32, #tpu.memory_space<vmem>>, vector<8x16xf32>
    %c0_1 = arith.constant 0 : index
    %c0_2 = arith.constant 0 : index
    %1 = vector.load %arg2[%c0_1, %c0_2] : memref<8x4xf32, #tpu.memory_space<vmem>>, vector<8x4xf32>
    %2 = vector.shape_cast %1 : vector<8x4xf32> to vector<1x8x4xf32>
    %3 = vector.shape_cast %2 : vector<1x8x4xf32> to vector<1x8x4xf32>
    %4 = vector.broadcast %3 : vector<1x8x4xf32> to vector<3x8x4xf32>
    %c0_3 = arith.constant 0 : index
    %c0_4 = arith.constant 0 : index
    %c0_5 = arith.constant 0 : index
    %5 = vector.load %arg3[%c0_3, %c0_4, %c0_5] : memref<3x4x32xf32, #tpu.memory_space<vmem>>, vector<3x4x32xf32>
    "tpu.trace_start"() <{level = 10 : i32, message = "nbe,neh->nbh"}> : () -> ()
    %cst = arith.constant dense<0.000000e+00> : vector<3x8x32xf32>
    %6 = tpu.matmul %4, %5, %cst {dimension_numbers = #tpu.dot_dimension_numbers<[2], [1], [1], [2], [0, 0, 0, 1, 1, 2], [0], [0]>} : vector<3x8x4xf32>, vector<3x4x32xf32>, vector<3x8x32xf32> -> vector<3x8x32xf32>
    "tpu.trace_stop"() : () -> ()
    %c0_6 = arith.constant 0 : index
    %c0_7 = arith.constant 0 : index
    %c0_8 = arith.constant 0 : index
    %7 = vector.load %arg4[%c0_6, %c0_7, %c0_8] : memref<3x1x32xf32, #tpu.memory_space<vmem>>, vector<3x1x32xf32>
    %8 = vector.broadcast %7 : vector<3x1x32xf32> to vector<3x8x32xf32>
    %9 = arith.addf %6, %8 : vector<3x8x32xf32>
    %cst_9 = arith.constant 0.000000e+00 : f32
    %10 = vector.broadcast %cst_9 : f32 to vector<3x8x32xf32>
    %11 = arith.cmpf ogt, %9, %10 : vector<3x8x32xf32>
    %cst_10 = arith.constant 0.000000e+00 : f32
    %12 = vector.broadcast %cst_10 : f32 to vector<3x8x32xf32>
    %13 = arith.minimumf %9, %12 : vector<3x8x32xf32>
    %14 = math.exp %13 : vector<3x8x32xf32>
    %cst_11 = arith.constant 1.000000e+00 : f32
    %15 = vector.broadcast %cst_11 : f32 to vector<3x8x32xf32>
    %16 = arith.subf %14, %15 : vector<3x8x32xf32>
    %17 = arith.select %11, %9, %16 : vector<3x8x32xi1>, vector<3x8x32xf32>
    %c0_12 = arith.constant 0 : index
    %c0_13 = arith.constant 0 : index
    %c0_14 = arith.constant 0 : index
    %18 = vector.load %arg5[%c0_12, %c0_13, %c0_14] : memref<3x32x32xf32, #tpu.memory_space<vmem>>, vector<3x32x32xf32>
    "tpu.trace_start"() <{level = 10 : i32, message = "nbh,nhk->nbk"}> : () -> ()
    %cst_15 = arith.constant dense<0.000000e+00> : vector<3x8x32xf32>
    %19 = tpu.matmul %17, %18, %cst_15 {dimension_numbers = #tpu.dot_dimension_numbers<[2], [1], [1], [2], [0, 0, 0, 1, 1, 2], [0], [0]>} : vector<3x8x32xf32>, vector<3x32x32xf32>, vector<3x8x32xf32> -> vector<3x8x32xf32>
    "tpu.trace_stop"() : () -> ()
    %c0_16 = arith.constant 0 : index
    %c0_17 = arith.constant 0 : index
    %c0_18 = arith.constant 0 : index
    %20 = vector.load %arg6[%c0_16, %c0_17, %c0_18] : memref<3x1x32xf32, #tpu.memory_space<vmem>>, vector<3x1x32xf32>
    %21 = vector.broadcast %20 : vector<3x1x32xf32> to vector<3x8x32xf32>
    %22 = arith.addf %19, %21 : vector<3x8x32xf32>
    %cst_19 = arith.constant 0.000000e+00 : f32
    %23 = vector.broadcast %cst_19 : f32 to vector<3x8x32xf32>
    %24 = arith.cmpf ogt, %22, %23 : vector<3x8x32xf32>
    %cst_20 = arith.constant 0.000000e+00 : f32
    %25 = vector.broadcast %cst_20 : f32 to vector<3x8x32xf32>
    %26 = arith.minimumf %22, %25 : vector<3x8x32xf32>
    %27 = math.exp %26 : vector<3x8x32xf32>
    %cst_21 = arith.constant 1.000000e+00 : f32
    %28 = vector.broadcast %cst_21 : f32 to vector<3x8x32xf32>
    %29 = arith.subf %27, %28 : vector<3x8x32xf32>
    %30 = arith.select %24, %22, %29 : vector<3x8x32xi1>, vector<3x8x32xf32>
    %c0_22 = arith.constant 0 : index
    %c0_23 = arith.constant 0 : index
    %c0_24 = arith.constant 0 : index
    %31 = vector.load %arg7[%c0_22, %c0_23, %c0_24] : memref<3x32x4xf32, #tpu.memory_space<vmem>>, vector<3x32x4xf32>
    "tpu.trace_start"() <{level = 10 : i32, message = "nbh,nhe->nbe"}> : () -> ()
    %cst_25 = arith.constant dense<0.000000e+00> : vector<3x8x4xf32>
    %32 = tpu.matmul %30, %31, %cst_25 {dimension_numbers = #tpu.dot_dimension_numbers<[2], [1], [1], [2], [0, 0, 0, 1, 1, 2], [0], [0]>} : vector<3x8x32xf32>, vector<3x32x4xf32>, vector<3x8x4xf32> -> vector<3x8x4xf32>
    "tpu.trace_stop"() : () -> ()
    %c0_26 = arith.constant 0 : index
    %c0_27 = arith.constant 0 : index
    %c0_28 = arith.constant 0 : index
    %33 = vector.load %arg8[%c0_26, %c0_27, %c0_28] : memref<3x1x4xf32, #tpu.memory_space<vmem>>, vector<3x1x4xf32>
    %34 = vector.broadcast %33 : vector<3x1x4xf32> to vector<3x8x4xf32>
    %35 = arith.addf %32, %34 : vector<3x8x4xf32>
    %36 = arith.addf %35, %4 : vector<3x8x4xf32>
    %cst_29 = arith.constant dense<0.000000e+00> : vector<3x8xf32>
    %37 = vector.multi_reduction <add>, %36, %cst_29 [2] : vector<3x8x4xf32> to vector<3x8xf32>
    %38 = vector.shape_cast %37 : vector<3x8xf32> to vector<3x8x1xf32>
    %cst_30 = arith.constant 4.000000e+00 : f32
    %39 = vector.broadcast %cst_30 : f32 to vector<3x8x1xf32>
    %40 = arith.divf %38, %39 : vector<3x8x1xf32>
    %41 = vector.broadcast %40 : vector<3x8x1xf32> to vector<3x8x4xf32>
    %42 = arith.subf %36, %41 : vector<3x8x4xf32>
    %43 = arith.mulf %42, %42 : vector<3x8x4xf32>
    %cst_31 = arith.constant dense<0.000000e+00> : vector<3x8xf32>
    %44 = vector.multi_reduction <add>, %43, %cst_31 [2] : vector<3x8x4xf32> to vector<3x8xf32>
    %45 = vector.shape_cast %44 : vector<3x8xf32> to vector<3x8x1xf32>
    %cst_32 = arith.constant 4.000000e+00 : f32
    %46 = vector.broadcast %cst_32 : f32 to vector<3x8x1xf32>
    %47 = arith.divf %45, %46 : vector<3x8x1xf32>
    %48 = vector.broadcast %40 : vector<3x8x1xf32> to vector<3x8x4xf32>
    %49 = arith.subf %36, %48 : vector<3x8x4xf32>
    %cst_33 = arith.constant 9.99999974E-6 : f32
    %50 = vector.broadcast %cst_33 : f32 to vector<3x8x1xf32>
    %51 = arith.addf %47, %50 : vector<3x8x1xf32>
    %52 = math.rsqrt %51 : vector<3x8x1xf32>
    %53 = vector.broadcast %52 : vector<3x8x1xf32> to vector<3x8x4xf32>
    %54 = arith.mulf %49, %53 : vector<3x8x4xf32>
    %c0_34 = arith.constant 0 : index
    %c0_35 = arith.constant 0 : index
    %c0_36 = arith.constant 0 : index
    %55 = vector.load %arg9[%c0_34, %c0_35, %c0_36] : memref<3x1x4xf32, #tpu.memory_space<vmem>>, vector<3x1x4xf32>
    %56 = vector.broadcast %55 : vector<3x1x4xf32> to vector<3x8x4xf32>
    %57 = arith.mulf %54, %56 : vector<3x8x4xf32>
    %c0_37 = arith.constant 0 : index
    %c0_38 = arith.constant 0 : index
    %c0_39 = arith.constant 0 : index
    %58 = vector.load %arg10[%c0_37, %c0_38, %c0_39] : memref<3x1x4xf32, #tpu.memory_space<vmem>>, vector<3x1x4xf32>
    %59 = vector.broadcast %58 : vector<3x1x4xf32> to vector<3x8x4xf32>
    %60 = arith.addf %57, %59 : vector<3x8x4xf32>
    %c0_40 = arith.constant 0 : index
    %c0_41 = arith.constant 0 : index
    %c0_42 = arith.constant 0 : index
    %61 = vector.load %arg12[%c0_40, %c0_41, %c0_42] : memref<3x4x32xf32, #tpu.memory_space<vmem>>, vector<3x4x32xf32>
    "tpu.trace_start"() <{level = 10 : i32, message = "nbe,neh->nbh"}> : () -> ()
    %cst_43 = arith.constant dense<0.000000e+00> : vector<3x8x32xf32>
    %62 = tpu.matmul %60, %61, %cst_43 {dimension_numbers = #tpu.dot_dimension_numbers<[2], [1], [1], [2], [0, 0, 0, 1, 1, 2], [0], [0]>} : vector<3x8x4xf32>, vector<3x4x32xf32>, vector<3x8x32xf32> -> vector<3x8x32xf32>
    %cst_44 = arith.constant 0.000000e+00 : f32
    "tpu.trace_stop"() : () -> ()
    %63 = vector.broadcast %cst_44 : f32 to vector<8x8xf32>
    %c0_45 = arith.constant 0 : index
    %c0_46 = arith.constant 0 : index
    %c0_47 = arith.constant 0 : index
    %64 = vector.load %arg11[%c0_45, %c0_46, %c0_47] : memref<3x16x32xf32, #tpu.memory_space<vmem>>, vector<1x16x32xf32>
    %65 = vector.shape_cast %64 : vector<1x16x32xf32> to vector<16x32xf32>
    %cst_48 = arith.constant dense<0.000000e+00> : vector<8x32xf32>
    %66 = tpu.matmul %0, %65, %cst_48 {dimension_numbers = #tpu.dot_dimension_numbers<[1], [0], [0], [1], [0, 0, 1, 1], [], []>} : vector<8x16xf32>, vector<16x32xf32>, vector<8x32xf32> -> vector<8x32xf32>
    %67 = vector.extract_strided_slice %62 {offsets = [0, 0, 0], sizes = [1, 8, 32], strides = [1, 1, 1]} : vector<3x8x32xf32> to vector<1x8x32xf32>
    %68 = vector.shape_cast %67 : vector<1x8x32xf32> to vector<8x32xf32>
    %69 = arith.addf %66, %68 : vector<8x32xf32>
    %c0_49 = arith.constant 0 : index
    %c0_50 = arith.constant 0 : index
    %c0_51 = arith.constant 0 : index
    %70 = vector.load %arg13[%c0_49, %c0_50, %c0_51] : memref<3x1x32xf32, #tpu.memory_space<vmem>>, vector<1x1x32xf32>
    %71 = vector.shape_cast %70 : vector<1x1x32xf32> to vector<1x32xf32>
    %72 = vector.broadcast %71 : vector<1x32xf32> to vector<8x32xf32>
    %73 = arith.addf %69, %72 : vector<8x32xf32>
    %cst_52 = arith.constant 0.000000e+00 : f32
    %74 = vector.broadcast %cst_52 : f32 to vector<8x32xf32>
    %75 = arith.maximumf %73, %74 : vector<8x32xf32>
    %c0_53 = arith.constant 0 : index
    %c0_54 = arith.constant 0 : index
    %c0_55 = arith.constant 0 : index
    %c0_56 = arith.constant 0 : index
    %76 = vector.load %arg14[%c0_53, %c0_54, %c0_55, %c0_56] : memref<3x1x32x32xf32, #tpu.memory_space<vmem>>, vector<1x1x32x32xf32>
    %77 = vector.shape_cast %76 : vector<1x1x32x32xf32> to vector<32x32xf32>
    %cst_57 = arith.constant dense<0.000000e+00> : vector<8x32xf32>
    %78 = tpu.matmul %75, %77, %cst_57 {dimension_numbers = #tpu.dot_dimension_numbers<[1], [0], [0], [1], [0, 0, 1, 1], [], []>} : vector<8x32xf32>, vector<32x32xf32>, vector<8x32xf32> -> vector<8x32xf32>
    %c0_58 = arith.constant 0 : index
    %c0_59 = arith.constant 0 : index
    %c0_60 = arith.constant 0 : index
    %c0_61 = arith.constant 0 : index
    %79 = vector.load %arg15[%c0_58, %c0_59, %c0_60, %c0_61] : memref<3x1x1x32xf32, #tpu.memory_space<vmem>>, vector<1x1x1x32xf32>
    %80 = vector.shape_cast %79 : vector<1x1x1x32xf32> to vector<1x32xf32>
    %81 = vector.broadcast %80 : vector<1x32xf32> to vector<8x32xf32>
    %82 = arith.addf %78, %81 : vector<8x32xf32>
    %cst_62 = arith.constant 0.000000e+00 : f32
    %83 = vector.broadcast %cst_62 : f32 to vector<8x32xf32>
    %84 = arith.maximumf %82, %83 : vector<8x32xf32>
    %c0_63 = arith.constant 0 : index
    %c0_64 = arith.constant 0 : index
    %c0_65 = arith.constant 0 : index
    %85 = vector.load %arg16[%c0_63, %c0_64, %c0_65] : memref<3x32x16xf32, #tpu.memory_space<vmem>>, vector<1x32x16xf32>
    %86 = vector.shape_cast %85 : vector<1x32x16xf32> to vector<32x16xf32>
    %cst_66 = arith.constant dense<0.000000e+00> : vector<8x16xf32>
    %87 = tpu.matmul %84, %86, %cst_66 {dimension_numbers = #tpu.dot_dimension_numbers<[1], [0], [0], [1], [0, 0, 1, 1], [], []>} : vector<8x32xf32>, vector<32x16xf32>, vector<8x16xf32> -> vector<8x16xf32>
    %c0_67 = arith.constant 0 : index
    %c0_68 = arith.constant 0 : index
    %c0_69 = arith.constant 0 : index
    %88 = vector.load %arg17[%c0_67, %c0_68, %c0_69] : memref<3x1x16xf32, #tpu.memory_space<vmem>>, vector<1x1x16xf32>
    %89 = vector.shape_cast %88 : vector<1x1x16xf32> to vector<1x16xf32>
    %90 = vector.broadcast %89 : vector<1x16xf32> to vector<8x16xf32>
    %91 = arith.addf %87, %90 : vector<8x16xf32>
    %c0_70 = arith.constant 0 : index
    %c0_71 = arith.constant 0 : index
    %c0_72 = arith.constant 0 : index
    %92 = vector.load %arg18[%c0_70, %c0_71, %c0_72] : memref<3x32x8xf32, #tpu.memory_space<vmem>>, vector<1x32x8xf32>
    %93 = vector.shape_cast %92 : vector<1x32x8xf32> to vector<32x8xf32>
    %cst_73 = arith.constant dense<0.000000e+00> : vector<8x8xf32>
    %94 = tpu.matmul %84, %93, %cst_73 {dimension_numbers = #tpu.dot_dimension_numbers<[1], [0], [0], [1], [0, 0, 1, 1], [], []>} : vector<8x32xf32>, vector<32x8xf32>, vector<8x8xf32> -> vector<8x8xf32>
    %c0_74 = arith.constant 0 : index
    %c0_75 = arith.constant 0 : index
    %c0_76 = arith.constant 0 : index
    %95 = vector.load %arg19[%c0_74, %c0_75, %c0_76] : memref<3x1x8xf32, #tpu.memory_space<vmem>>, vector<1x1x8xf32>
    %96 = vector.shape_cast %95 : vector<1x1x8xf32> to vector<1x8xf32>
    %97 = vector.broadcast %96 : vector<1x8xf32> to vector<8x8xf32>
    %98 = arith.addf %94, %97 : vector<8x8xf32>
    %99 = arith.subf %0, %91 : vector<8x16xf32>
    %100 = arith.addf %63, %98 : vector<8x8xf32>
    %c1 = arith.constant 1 : index
    %c0_77 = arith.constant 0 : index
    %c0_78 = arith.constant 0 : index
    %101 = vector.load %arg11[%c1, %c0_77, %c0_78] : memref<3x16x32xf32, #tpu.memory_space<vmem>>, vector<1x16x32xf32>
    %102 = vector.shape_cast %101 : vector<1x16x32xf32> to vector<16x32xf32>
    %cst_79 = arith.constant dense<0.000000e+00> : vector<8x32xf32>
    %103 = tpu.matmul %99, %102, %cst_79 {dimension_numbers = #tpu.dot_dimension_numbers<[1], [0], [0], [1], [0, 0, 1, 1], [], []>} : vector<8x16xf32>, vector<16x32xf32>, vector<8x32xf32> -> vector<8x32xf32>
    %104 = vector.extract_strided_slice %62 {offsets = [1, 0, 0], sizes = [1, 8, 32], strides = [1, 1, 1]} : vector<3x8x32xf32> to vector<1x8x32xf32>
    %105 = vector.shape_cast %104 : vector<1x8x32xf32> to vector<8x32xf32>
    %106 = arith.addf %103, %105 : vector<8x32xf32>
    %c1_80 = arith.constant 1 : index
    %c0_81 = arith.constant 0 : index
    %c0_82 = arith.constant 0 : index
    %107 = vector.load %arg13[%c1_80, %c0_81, %c0_82] : memref<3x1x32xf32, #tpu.memory_space<vmem>>, vector<1x1x32xf32>
    %108 = vector.shape_cast %107 : vector<1x1x32xf32> to vector<1x32xf32>
    %109 = vector.broadcast %108 : vector<1x32xf32> to vector<8x32xf32>
    %110 = arith.addf %106, %109 : vector<8x32xf32>
    %cst_83 = arith.constant 0.000000e+00 : f32
    %111 = vector.broadcast %cst_83 : f32 to vector<8x32xf32>
    %112 = arith.maximumf %110, %111 : vector<8x32xf32>
    %c1_84 = arith.constant 1 : index
    %c0_85 = arith.constant 0 : index
    %c0_86 = arith.constant 0 : index
    %c0_87 = arith.constant 0 : index
    %113 = vector.load %arg14[%c1_84, %c0_85, %c0_86, %c0_87] : memref<3x1x32x32xf32, #tpu.memory_space<vmem>>, vector<1x1x32x32xf32>
    %114 = vector.shape_cast %113 : vector<1x1x32x32xf32> to vector<32x32xf32>
    %cst_88 = arith.constant dense<0.000000e+00> : vector<8x32xf32>
    %115 = tpu.matmul %112, %114, %cst_88 {dimension_numbers = #tpu.dot_dimension_numbers<[1], [0], [0], [1], [0, 0, 1, 1], [], []>} : vector<8x32xf32>, vector<32x32xf32>, vector<8x32xf32> -> vector<8x32xf32>
    %c1_89 = arith.constant 1 : index
    %c0_90 = arith.constant 0 : index
    %c0_91 = arith.constant 0 : index
    %c0_92 = arith.constant 0 : index
    %116 = vector.load %arg15[%c1_89, %c0_90, %c0_91, %c0_92] : memref<3x1x1x32xf32, #tpu.memory_space<vmem>>, vector<1x1x1x32xf32>
    %117 = vector.shape_cast %116 : vector<1x1x1x32xf32> to vector<1x32xf32>
    %118 = vector.broadcast %117 : vector<1x32xf32> to vector<8x32xf32>
    %119 = arith.addf %115, %118 : vector<8x32xf32>
    %cst_93 = arith.constant 0.000000e+00 : f32
    %120 = vector.broadcast %cst_93 : f32 to vector<8x32xf32>
    %121 = arith.maximumf %119, %120 : vector<8x32xf32>
    %c1_94 = arith.constant 1 : index
    %c0_95 = arith.constant 0 : index
    %c0_96 = arith.constant 0 : index
    %122 = vector.load %arg16[%c1_94, %c0_95, %c0_96] : memref<3x32x16xf32, #tpu.memory_space<vmem>>, vector<1x32x16xf32>
    %123 = vector.shape_cast %122 : vector<1x32x16xf32> to vector<32x16xf32>
    %cst_97 = arith.constant dense<0.000000e+00> : vector<8x16xf32>
    %124 = tpu.matmul %121, %123, %cst_97 {dimension_numbers = #tpu.dot_dimension_numbers<[1], [0], [0], [1], [0, 0, 1, 1], [], []>} : vector<8x32xf32>, vector<32x16xf32>, vector<8x16xf32> -> vector<8x16xf32>
    %c1_98 = arith.constant 1 : index
    %c0_99 = arith.constant 0 : index
    %c0_100 = arith.constant 0 : index
    %125 = vector.load %arg17[%c1_98, %c0_99, %c0_100] : memref<3x1x16xf32, #tpu.memory_space<vmem>>, vector<1x1x16xf32>
    %126 = vector.shape_cast %125 : vector<1x1x16xf32> to vector<1x16xf32>
    %127 = vector.broadcast %126 : vector<1x16xf32> to vector<8x16xf32>
    %128 = arith.addf %124, %127 : vector<8x16xf32>
    %c1_101 = arith.constant 1 : index
    %c0_102 = arith.constant 0 : index
    %c0_103 = arith.constant 0 : index
    %129 = vector.load %arg18[%c1_101, %c0_102, %c0_103] : memref<3x32x8xf32, #tpu.memory_space<vmem>>, vector<1x32x8xf32>
    %130 = vector.shape_cast %129 : vector<1x32x8xf32> to vector<32x8xf32>
    %cst_104 = arith.constant dense<0.000000e+00> : vector<8x8xf32>
    %131 = tpu.matmul %121, %130, %cst_104 {dimension_numbers = #tpu.dot_dimension_numbers<[1], [0], [0], [1], [0, 0, 1, 1], [], []>} : vector<8x32xf32>, vector<32x8xf32>, vector<8x8xf32> -> vector<8x8xf32>
    %c1_105 = arith.constant 1 : index
    %c0_106 = arith.constant 0 : index
    %c0_107 = arith.constant 0 : index
    %132 = vector.load %arg19[%c1_105, %c0_106, %c0_107] : memref<3x1x8xf32, #tpu.memory_space<vmem>>, vector<1x1x8xf32>
    %133 = vector.shape_cast %132 : vector<1x1x8xf32> to vector<1x8xf32>
    %134 = vector.broadcast %133 : vector<1x8xf32> to vector<8x8xf32>
    %135 = arith.addf %131, %134 : vector<8x8xf32>
    %136 = arith.subf %99, %128 : vector<8x16xf32>
    %137 = arith.addf %100, %135 : vector<8x8xf32>
    %c2 = arith.constant 2 : index
    %c0_108 = arith.constant 0 : index
    %c0_109 = arith.constant 0 : index
    %138 = vector.load %arg11[%c2, %c0_108, %c0_109] : memref<3x16x32xf32, #tpu.memory_space<vmem>>, vector<1x16x32xf32>
    %139 = vector.shape_cast %138 : vector<1x16x32xf32> to vector<16x32xf32>
    %cst_110 = arith.constant dense<0.000000e+00> : vector<8x32xf32>
    %140 = tpu.matmul %136, %139, %cst_110 {dimension_numbers = #tpu.dot_dimension_numbers<[1], [0], [0], [1], [0, 0, 1, 1], [], []>} : vector<8x16xf32>, vector<16x32xf32>, vector<8x32xf32> -> vector<8x32xf32>
    %141 = vector.extract_strided_slice %62 {offsets = [2, 0, 0], sizes = [1, 8, 32], strides = [1, 1, 1]} : vector<3x8x32xf32> to vector<1x8x32xf32>
    %142 = vector.shape_cast %141 : vector<1x8x32xf32> to vector<8x32xf32>
    %143 = arith.addf %140, %142 : vector<8x32xf32>
    %c2_111 = arith.constant 2 : index
    %c0_112 = arith.constant 0 : index
    %c0_113 = arith.constant 0 : index
    %144 = vector.load %arg13[%c2_111, %c0_112, %c0_113] : memref<3x1x32xf32, #tpu.memory_space<vmem>>, vector<1x1x32xf32>
    %145 = vector.shape_cast %144 : vector<1x1x32xf32> to vector<1x32xf32>
    %146 = vector.broadcast %145 : vector<1x32xf32> to vector<8x32xf32>
    %147 = arith.addf %143, %146 : vector<8x32xf32>
    %cst_114 = arith.constant 0.000000e+00 : f32
    %148 = vector.broadcast %cst_114 : f32 to vector<8x32xf32>
    %149 = arith.maximumf %147, %148 : vector<8x32xf32>
    %c2_115 = arith.constant 2 : index
    %c0_116 = arith.constant 0 : index
    %c0_117 = arith.constant 0 : index
    %c0_118 = arith.constant 0 : index
    %150 = vector.load %arg14[%c2_115, %c0_116, %c0_117, %c0_118] : memref<3x1x32x32xf32, #tpu.memory_space<vmem>>, vector<1x1x32x32xf32>
    %151 = vector.shape_cast %150 : vector<1x1x32x32xf32> to vector<32x32xf32>
    %cst_119 = arith.constant dense<0.000000e+00> : vector<8x32xf32>
    %152 = tpu.matmul %149, %151, %cst_119 {dimension_numbers = #tpu.dot_dimension_numbers<[1], [0], [0], [1], [0, 0, 1, 1], [], []>} : vector<8x32xf32>, vector<32x32xf32>, vector<8x32xf32> -> vector<8x32xf32>
    %c2_120 = arith.constant 2 : index
    %c0_121 = arith.constant 0 : index
    %c0_122 = arith.constant 0 : index
    %c0_123 = arith.constant 0 : index
    %153 = vector.load %arg15[%c2_120, %c0_121, %c0_122, %c0_123] : memref<3x1x1x32xf32, #tpu.memory_space<vmem>>, vector<1x1x1x32xf32>
    %154 = vector.shape_cast %153 : vector<1x1x1x32xf32> to vector<1x32xf32>
    %155 = vector.broadcast %154 : vector<1x32xf32> to vector<8x32xf32>
    %156 = arith.addf %152, %155 : vector<8x32xf32>
    %cst_124 = arith.constant 0.000000e+00 : f32
    %157 = vector.broadcast %cst_124 : f32 to vector<8x32xf32>
    %158 = arith.maximumf %156, %157 : vector<8x32xf32>
    %c2_125 = arith.constant 2 : index
    %c0_126 = arith.constant 0 : index
    %c0_127 = arith.constant 0 : index
    %159 = vector.load %arg16[%c2_125, %c0_126, %c0_127] : memref<3x32x16xf32, #tpu.memory_space<vmem>>, vector<1x32x16xf32>
    %160 = vector.shape_cast %159 : vector<1x32x16xf32> to vector<32x16xf32>
    %cst_128 = arith.constant dense<0.000000e+00> : vector<8x16xf32>
    %161 = tpu.matmul %158, %160, %cst_128 {dimension_numbers = #tpu.dot_dimension_numbers<[1], [0], [0], [1], [0, 0, 1, 1], [], []>} : vector<8x32xf32>, vector<32x16xf32>, vector<8x16xf32> -> vector<8x16xf32>
    %c2_129 = arith.constant 2 : index
    %c0_130 = arith.constant 0 : index
    %c0_131 = arith.constant 0 : index
    %162 = vector.load %arg17[%c2_129, %c0_130, %c0_131] : memref<3x1x16xf32, #tpu.memory_space<vmem>>, vector<1x1x16xf32>
    %163 = vector.shape_cast %162 : vector<1x1x16xf32> to vector<1x16xf32>
    %164 = vector.broadcast %163 : vector<1x16xf32> to vector<8x16xf32>
    %165 = arith.addf %161, %164 : vector<8x16xf32>
    %c2_132 = arith.constant 2 : index
    %c0_133 = arith.constant 0 : index
    %c0_134 = arith.constant 0 : index
    %166 = vector.load %arg18[%c2_132, %c0_133, %c0_134] : memref<3x32x8xf32, #tpu.memory_space<vmem>>, vector<1x32x8xf32>
    %167 = vector.shape_cast %166 : vector<1x32x8xf32> to vector<32x8xf32>
    %cst_135 = arith.constant dense<0.000000e+00> : vector<8x8xf32>
    %168 = tpu.matmul %158, %167, %cst_135 {dimension_numbers = #tpu.dot_dimension_numbers<[1], [0], [0], [1], [0, 0, 1, 1], [], []>} : vector<8x32xf32>, vector<32x8xf32>, vector<8x8xf32> -> vector<8x8xf32>
    %c2_136 = arith.constant 2 : index
    %c0_137 = arith.constant 0 : index
    %c0_138 = arith.constant 0 : index
    %169 = vector.load %arg19[%c2_136, %c0_137, %c0_138] : memref<3x1x8xf32, #tpu.memory_space<vmem>>, vector<1x1x8xf32>
    %170 = vector.shape_cast %169 : vector<1x1x8xf32> to vector<1x8xf32>
    %171 = vector.broadcast %170 : vector<1x8xf32> to vector<8x8xf32>
    %172 = arith.addf %168, %171 : vector<8x8xf32>
    %173 = arith.subf %136, %165 : vector<8x16xf32>
    %174 = arith.addf %137, %172 : vector<8x8xf32>
    %175 = tpu.concatenate %173, %174 in 1 : vector<8x16xf32>, vector<8x8xf32> -> vector<8x24xf32>
    %c0_139 = arith.constant 0 : index
    %c0_140 = arith.constant 0 : index
    %176 = vector.load %arg20[%c0_139, %c0_140] : memref<8x24xf32, #tpu.memory_space<vmem>>, vector<8x24xf32>
    tpu.vector_store %arg20[%c0_139, %c0_140], %175 {strides = array<i32>} : memref<8x24xf32, #tpu.memory_space<vmem>>, vector<8x24xf32>,
    return
  }
  func.func @transform_0(%arg0: i32) -> (i32, i32) {
    %c0_i32 = arith.constant 0 : i32
    %c0_i32_0 = arith.constant 0 : i32
    return %arg0, %c0_i32 : i32, i32
  }
  func.func @transform_1(%arg0: i32) -> (i32, i32) {
    %c0_i32 = arith.constant 0 : i32
    %c0_i32_0 = arith.constant 0 : i32
    return %arg0, %c0_i32 : i32, i32
  }
  func.func @transform_2(%arg0: i32) -> (i32, i32, i32) {
    %c0_i32 = arith.constant 0 : i32
    %c0_i32_0 = arith.constant 0 : i32
    %c0_i32_1 = arith.constant 0 : i32
    %c0_i32_2 = arith.constant 0 : i32
    return %c0_i32, %c0_i32_0, %c0_i32_1 : i32, i32, i32
  }
  func.func @transform_3(%arg0: i32) -> (i32, i32, i32) {
    %c0_i32 = arith.constant 0 : i32
    %c0_i32_0 = arith.constant 0 : i32
    %c0_i32_1 = arith.constant 0 : i32
    %c0_i32_2 = arith.constant 0 : i32
    return %c0_i32, %c0_i32_0, %c0_i32_1 : i32, i32, i32
  }
  func.func @transform_4(%arg0: i32) -> (i32, i32, i32) {
    %c0_i32 = arith.constant 0 : i32
    %c0_i32_0 = arith.constant 0 : i32
    %c0_i32_1 = arith.constant 0 : i32
    %c0_i32_2 = arith.constant 0 : i32
    return %c0_i32, %c0_i32_0, %c0_i32_1 : i32, i32, i32
  }
  func.func @transform_5(%arg0: i32) -> (i32, i32, i32) {
    %c0_i32 = arith.constant 0 : i32
    %c0_i32_0 = arith.constant 0 : i32
    %c0_i32_1 = arith.constant 0 : i32
    %c0_i32_2 = arith.constant 0 : i32
    return %c0_i32, %c0_i32_0, %c0_i32_1 : i32, i32, i32
  }
  func.func @transform_6(%arg0: i32) -> (i32, i32, i32) {
    %c0_i32 = arith.constant 0 : i32
    %c0_i32_0 = arith.constant 0 : i32
    %c0_i32_1 = arith.constant 0 : i32
    %c0_i32_2 = arith.constant 0 : i32
    return %c0_i32, %c0_i32_0, %c0_i32_1 : i32, i32, i32
  }
  func.func @transform_7(%arg0: i32) -> (i32, i32, i32) {
    %c0_i32 = arith.constant 0 : i32
    %c0_i32_0 = arith.constant 0 : i32
    %c0_i32_1 = arith.constant 0 : i32
    %c0_i32_2 = arith.constant 0 : i32
    return %c0_i32, %c0_i32_0, %c0_i32_1 : i32, i32, i32
  }
  func.func @transform_8(%arg0: i32) -> (i32, i32, i32) {
    %c0_i32 = arith.constant 0 : i32
    %c0_i32_0 = arith.constant 0 : i32
    %c0_i32_1 = arith.constant 0 : i32
    %c0_i32_2 = arith.constant 0 : i32
    return %c0_i32, %c0_i32_0, %c0_i32_1 : i32, i32, i32
  }
  func.func @transform_9(%arg0: i32) -> (i32, i32, i32) {
    %c0_i32 = arith.constant 0 : i32
    %c0_i32_0 = arith.constant 0 : i32
    %c0_i32_1 = arith.constant 0 : i32
    %c0_i32_2 = arith.constant 0 : i32
    return %c0_i32, %c0_i32_0, %c0_i32_1 : i32, i32, i32
  }
  func.func @transform_10(%arg0: i32) -> (i32, i32, i32) {
    %c0_i32 = arith.constant 0 : i32
    %c0_i32_0 = arith.constant 0 : i32
    %c0_i32_1 = arith.constant 0 : i32
    %c0_i32_2 = arith.constant 0 : i32
    return %c0_i32, %c0_i32_0, %c0_i32_1 : i32, i32, i32
  }
  func.func @transform_11(%arg0: i32) -> (i32, i32, i32) {
    %c0_i32 = arith.constant 0 : i32
    %c0_i32_0 = arith.constant 0 : i32
    %c0_i32_1 = arith.constant 0 : i32
    %c0_i32_2 = arith.constant 0 : i32
    return %c0_i32, %c0_i32_0, %c0_i32_1 : i32, i32, i32
  }
  func.func @transform_12(%arg0: i32) -> (i32, i32, i32) {
    %c0_i32 = arith.constant 0 : i32
    %c0_i32_0 = arith.constant 0 : i32
    %c0_i32_1 = arith.constant 0 : i32
    %c0_i32_2 = arith.constant 0 : i32
    return %c0_i32, %c0_i32_0, %c0_i32_1 : i32, i32, i32
  }
  func.func @transform_13(%arg0: i32) -> (i32, i32, i32, i32) {
    %c0_i32 = arith.constant 0 : i32
    %c0_i32_0 = arith.constant 0 : i32
    %c0_i32_1 = arith.constant 0 : i32
    %c0_i32_2 = arith.constant 0 : i32
    %c0_i32_3 = arith.constant 0 : i32
    return %c0_i32, %c0_i32_0, %c0_i32_1, %c0_i32_2 : i32, i32, i32, i32
  }
  func.func @transform_14(%arg0: i32) -> (i32, i32, i32, i32) {
    %c0_i32 = arith.constant 0 : i32
    %c0_i32_0 = arith.constant 0 : i32
    %c0_i32_1 = arith.constant 0 : i32
    %c0_i32_2 = arith.constant 0 : i32
    %c0_i32_3 = arith.constant 0 : i32
    return %c0_i32, %c0_i32_0, %c0_i32_1, %c0_i32_2 : i32, i32, i32, i32
  }
  func.func @transform_15(%arg0: i32) -> (i32, i32, i32) {
    %c0_i32 = arith.constant 0 : i32
    %c0_i32_0 = arith.constant 0 : i32
    %c0_i32_1 = arith.constant 0 : i32
    %c0_i32_2 = arith.constant 0 : i32
    return %c0_i32, %c0_i32_0, %c0_i32_1 : i32, i32, i32
  }
  func.func @transform_16(%arg0: i32) -> (i32, i32, i32) {
    %c0_i32 = arith.constant 0 : i32
    %c0_i32_0 = arith.constant 0 : i32
    %c0_i32_1 = arith.constant 0 : i32
    %c0_i32_2 = arith.constant 0 : i32
    return %c0_i32, %c0_i32_0, %c0_i32_1 : i32, i32, i32
  }
  func.func @transform_17(%arg0: i32) -> (i32, i32, i32) {
    %c0_i32 = arith.constant 0 : i32
    %c0_i32_0 = arith.constant 0 : i32
    %c0_i32_1 = arith.constant 0 : i32
    %c0_i32_2 = arith.constant 0 : i32
    return %c0_i32, %c0_i32_0, %c0_i32_1 : i32, i32, i32
  }
  func.func @transform_18(%arg0: i32) -> (i32, i32, i32) {
    %c0_i32 = arith.constant 0 : i32
    %c0_i32_0 = arith.constant 0 : i32
    %c0_i32_1 = arith.constant 0 : i32
    %c0_i32_2 = arith.constant 0 : i32
    return %c0_i32, %c0_i32_0, %c0_i32_1 : i32, i32, i32
  }
  func.func @transform_19(%arg0: i32) -> (i32, i32) {
    %c0_i32 = arith.constant 0 : i32
    %c0_i32_0 = arith.constant 0 : i32
    return %arg0, %c0_i32 : i32, i32
  }
}

</mosaic_0001>

<llo_original>
// kernel: tpu_custom_call.1
$region0: #{tpu_custom_call.1}
  #allocation0 [shape = 'u32[]', space=smem, size = 0x4, offset = 0x4, fixed_abs, tag = 'smem constant byte address 0x4 - core index']
  #allocation1 [shape = 'u32[144,128]{1,0:T(1,128)}', space=vmem, size = 0x12000, scoped, tag = 'internal scratch']
  %s0 = inlined_call_operand.vmem [shape: f32[8,16], index: 0, kind: input, shape index: {}]
  %s1 = inlined_call_operand.vmem [shape: f32[8,4], index: 1, kind: input, shape index: {}]
  %s2 = inlined_call_operand.vmem [shape: f32[3,4,32], index: 2, kind: input, shape index: {}]
  %s3 = inlined_call_operand.vmem [shape: f32[3,1,32], index: 3, kind: input, shape index: {}]
  %s4 = inlined_call_operand.vmem [shape: f32[3,32,32], index: 4, kind: input, shape index: {}]
  %s5 = inlined_call_operand.vmem [shape: f32[3,1,32], index: 5, kind: input, shape index: {}]
  %s6 = inlined_call_operand.vmem [shape: f32[3,32,4], index: 6, kind: input, shape index: {}]
  %s7 = inlined_call_operand.vmem [shape: f32[3,1,4], index: 7, kind: input, shape index: {}]
  %s8 = inlined_call_operand.vmem [shape: f32[3,1,4], index: 8, kind: input, shape index: {}]
  %s9 = inlined_call_operand.vmem [shape: f32[3,1,4], index: 9, kind: input, shape index: {}]
  %s10 = inlined_call_operand.vmem [shape: f32[3,16,32], index: 10, kind: input, shape index: {}]
  %s11 = inlined_call_operand.vmem [shape: f32[3,4,32], index: 11, kind: input, shape index: {}]
  %s12 = inlined_call_operand.vmem [shape: f32[3,1,32], index: 12, kind: input, shape index: {}]
  %s13 = inlined_call_operand.vmem [shape: f32[3,1,32,32], index: 13, kind: input, shape index: {}]
  %s14 = inlined_call_operand.vmem [shape: f32[3,1,1,32], index: 14, kind: input, shape index: {}]
  %s15 = inlined_call_operand.vmem [shape: f32[3,32,16], index: 15, kind: input, shape index: {}]
  %s16 = inlined_call_operand.vmem [shape: f32[3,1,16], index: 16, kind: input, shape index: {}]
  %s17 = inlined_call_operand.vmem [shape: f32[3,32,8], index: 17, kind: input, shape index: {}]
  %s18 = inlined_call_operand.vmem [shape: f32[3,1,8], index: 18, kind: input, shape index: {}]
  %s19 = inlined_call_operand.hbm [shape: f32[8,24], index: 19, kind: output, shape index: {}]
  %s20 = sld [smem:[#allocation0]]
  $region86: #{tpu_custom_call.1} parent=0
    _
  %s22 = ssub.s32 1, %s20
  %s23 = scalar_select 0, %s22, %s20
  $region1: #{tpu_custom_call.1} parent=0
    #allocation2 [shape = 'u8[4096]{0}', space=vmem, size = 0x1000, scoped, tag = 'output window, operand 0, single buffered']
    #allocation3 [shape = 's32[1]{0}', space=sflag, size = 0x4, scoped, tag = 'scoped memory for tpu_custom_call.1']
    %24 = vsyncpa [#allocation3], 0
    // Predicated region
    $region2: #{tpu_custom_call.1} parent=1 // pred_check
      _
    $region3: #{tpu_custom_call.1} parent=1 // pred_check_branch
      %26 = sbr.rel (0) target = $region5
    $region4: #{tpu_custom_call.1} parent=1 // pred_region
      _
    $region5: #{tpu_custom_call.1} parent=1 // pred_fallthru
      _
    // Predicated region
    $region6: #{tpu_custom_call.1} parent=1 // pred_check
      _
    $region7: #{tpu_custom_call.1} parent=1 // pred_check_branch
      %28 = sbr.rel (0) target = $region9
    $region8: #{tpu_custom_call.1} parent=1 // pred_region
      _
    $region9: #{tpu_custom_call.1} parent=1 // pred_fallthru
      _
    // Predicated region
    $region10: #{tpu_custom_call.1} parent=1 // pred_check
      _
    $region11: #{tpu_custom_call.1} parent=1 // pred_check_branch
      %30 = sbr.rel (0) target = $region13
    $region12: #{tpu_custom_call.1} parent=1 // pred_region
      _
    $region13: #{tpu_custom_call.1} parent=1 // pred_fallthru
      _
    // Predicated region
    $region14: #{tpu_custom_call.1} parent=1 // pred_check
      _
    $region15: #{tpu_custom_call.1} parent=1 // pred_check_branch
      %32 = sbr.rel (0) target = $region17
    $region16: #{tpu_custom_call.1} parent=1 // pred_region
      _
    $region17: #{tpu_custom_call.1} parent=1 // pred_fallthru
      _
    // Predicated region
    $region18: #{tpu_custom_call.1} parent=1 // pred_check
      _
    $region19: #{tpu_custom_call.1} parent=1 // pred_check_branch
      %34 = sbr.rel (0) target = $region21
    $region20: #{tpu_custom_call.1} parent=1 // pred_region
      _
    $region21: #{tpu_custom_call.1} parent=1 // pred_fallthru
      _
    // Predicated region
    $region22: #{tpu_custom_call.1} parent=1 // pred_check
      _
    $region23: #{tpu_custom_call.1} parent=1 // pred_check_branch
      %36 = sbr.rel (0) target = $region25
    $region24: #{tpu_custom_call.1} parent=1 // pred_region
      _
    $region25: #{tpu_custom_call.1} parent=1 // pred_fallthru
      _
    // Predicated region
    $region26: #{tpu_custom_call.1} parent=1 // pred_check
      _
    $region27: #{tpu_custom_call.1} parent=1 // pred_check_branch
      %38 = sbr.rel (0) target = $region29
    $region28: #{tpu_custom_call.1} parent=1 // pred_region
      _
    $region29: #{tpu_custom_call.1} parent=1 // pred_fallthru
      _
    // Predicated region
    $region30: #{tpu_custom_call.1} parent=1 // pred_check
      _
    $region31: #{tpu_custom_call.1} parent=1 // pred_check_branch
      %40 = sbr.rel (0) target = $region33
    $region32: #{tpu_custom_call.1} parent=1 // pred_region
      _
    $region33: #{tpu_custom_call.1} parent=1 // pred_fallthru
      _
    // Predicated region
    $region34: #{tpu_custom_call.1} parent=1 // pred_check
      _
    $region35: #{tpu_custom_call.1} parent=1 // pred_check_branch
      %42 = sbr.rel (0) target = $region37
    $region36: #{tpu_custom_call.1} parent=1 // pred_region
      _
    $region37: #{tpu_custom_call.1} parent=1 // pred_fallthru
      _
    // Predicated region
    $region38: #{tpu_custom_call.1} parent=1 // pred_check
      _
    $region39: #{tpu_custom_call.1} parent=1 // pred_check_branch
      %44 = sbr.rel (0) target = $region41
    $region40: #{tpu_custom_call.1} parent=1 // pred_region
      _
    $region41: #{tpu_custom_call.1} parent=1 // pred_fallthru
      _
    // Predicated region
    $region42: #{tpu_custom_call.1} parent=1 // pred_check
      _
    $region43: #{tpu_custom_call.1} parent=1 // pred_check_branch
      %46 = sbr.rel (0) target = $region45
    $region44: #{tpu_custom_call.1} parent=1 // pred_region
      _
    $region45: #{tpu_custom_call.1} parent=1 // pred_fallthru
      _
    // Predicated region
    $region46: #{tpu_custom_call.1} parent=1 // pred_check
      _
    $region47: #{tpu_custom_call.1} parent=1 // pred_check_branch
      %48 = sbr.rel (0) target = $region49
    $region48: #{tpu_custom_call.1} parent=1 // pred_region
      _
    $region49: #{tpu_custom_call.1} parent=1 // pred_fallthru
      _
    // Predicated region
    $region50: #{tpu_custom_call.1} parent=1 // pred_check
      _
    $region51: #{tpu_custom_call.1} parent=1 // pred_check_branch
      %50 = sbr.rel (0) target = $region53
    $region52: #{tpu_custom_call.1} parent=1 // pred_region
      _
    $region53: #{tpu_custom_call.1} parent=1 // pred_fallthru
      _
    // Predicated region
    $region54: #{tpu_custom_call.1} parent=1 // pred_check
      _
    $region55: #{tpu_custom_call.1} parent=1 // pred_check_branch
      %52 = sbr.rel (0) target = $region57
    $region56: #{tpu_custom_call.1} parent=1 // pred_region
      _
    $region57: #{tpu_custom_call.1} parent=1 // pred_fallthru
      _
    // Predicated region
    $region58: #{tpu_custom_call.1} parent=1 // pred_check
      _
    $region59: #{tpu_custom_call.1} parent=1 // pred_check_branch
      %54 = sbr.rel (0) target = $region61
    $region60: #{tpu_custom_call.1} parent=1 // pred_region
      _
    $region61: #{tpu_custom_call.1} parent=1 // pred_fallthru
      _
    // Predicated region
    $region62: #{tpu_custom_call.1} parent=1 // pred_check
      _
    $region63: #{tpu_custom_call.1} parent=1 // pred_check_branch
      %56 = sbr.rel (0) target = $region65
    $region64: #{tpu_custom_call.1} parent=1 // pred_region
      _
    $region65: #{tpu_custom_call.1} parent=1 // pred_fallthru
      _
    // Predicated region
    $region66: #{tpu_custom_call.1} parent=1 // pred_check
      _
    $region67: #{tpu_custom_call.1} parent=1 // pred_check_branch
      %58 = sbr.rel (0) target = $region69
    $region68: #{tpu_custom_call.1} parent=1 // pred_region
      _
    $region69: #{tpu_custom_call.1} parent=1 // pred_fallthru
      _
    // Predicated region
    $region70: #{tpu_custom_call.1} parent=1 // pred_check
      _
    $region71: #{tpu_custom_call.1} parent=1 // pred_check_branch
      %60 = sbr.rel (0) target = $region73
    $region72: #{tpu_custom_call.1} parent=1 // pred_region
      _
    $region73: #{tpu_custom_call.1} parent=1 // pred_fallthru
      _
    // Predicated region
    $region74: #{tpu_custom_call.1} parent=1 // pred_check
      _
    $region75: #{tpu_custom_call.1} parent=1 // pred_check_branch
      %62 = sbr.rel (0) target = $region77
    $region76: #{tpu_custom_call.1} parent=1 // pred_region
      _
    $region77: #{tpu_custom_call.1} parent=1 // pred_fallthru
      _
    %v63 = vld [vmem:[%s0] sm:$0xff]
    %v64 = vld [vmem:[%s1] sm:$0xff]
    %v65 = vld [vmem:[%s2] sm:$0xf]
    %v66 = vld [vmem:[%s2 + $0x4] sm:$0xf]
    %v67 = vld [vmem:[%s2 + $0x8] sm:$0xf]
    %v68 = vld [vmem:[%s3] sm:$0x1]
    %v69 = vld [vmem:[%s3 + $0x1] sm:$0x1]
    %v70 = vld [vmem:[%s3 + $0x2] sm:$0x1]
    %v74 = vlaneseq
    %v75 = vshrl.u32 %v74, 7
    %v76 = vsub.s32 0, %v75
    %v77 = vrot.slane %v68, %v76
    %v78 = vlaneseq
    %v79 = vshrl.u32 %v78, 7
    %v80 = vsub.s32 0, %v79
    %v81 = vrot.slane %v69, %v80
    %v82 = vlaneseq
    %v83 = vshrl.u32 %v82, 7
    %v84 = vsub.s32 0, %v83
    %v85 = vrot.slane %v70, %v84
    %vm89 = vcmask 31744
    %v91 = vsel %vm89, %v64, 0
    %vm93 = vcmask 1043456
    %v95 = vsel %vm93, %v65, 0
    %97 = vmatprep.subr.mxu0 0.0
    %98 = vmatpush1.msra.mxu0 %v95
    %99 = vmatprep.subr.mxu0 0.0
    %100 = vmatpush1.msra.mxu0 0.0
    %101 = vmatprep.subr.mxu0 0.0
    %102 = vmatpush1.msra.mxu0 0.0
    %103 = vmatprep.subr.mxu0 0.0
    %104 = vmatpush1.msra.mxu0 0.0
    %105 = vmatprep.subr.mxu0 0.0
    %106 = vmatpush1.msra.mxu0 0.0
    %107 = vmatprep.subr.mxu0 0.0
    %108 = vmatpush1.msra.mxu0 0.0
    %109 = vmatprep.subr.mxu0 0.0
    %110 = vmatpush1.msra.mxu0 0.0
    %111 = vmatprep.subr.mxu0 0.0
    %112 = vmatpush1.msra.mxu0 0.0
    %113 = vmatprep.subr.mxu0 0.0
    %114 = vmatpush1.msra.mxu0 0.0
    %115 = vmatprep.subr.mxu0 0.0
    %116 = vmatpush1.msra.mxu0 0.0
    %117 = vmatprep.subr.mxu0 0.0
    %118 = vmatpush1.msra.mxu0 0.0
    %119 = vmatprep.subr.mxu0 0.0
    %120 = vmatpush1.msra.mxu0 0.0
    %121 = vmatprep.subr.mxu0 0.0
    %122 = vmatpush1.msra.mxu0 0.0
    %123 = vmatprep.subr.mxu0 0.0
    %124 = vmatpush1.msra.mxu0 0.0
    %125 = vmatprep.subr.mxu0 0.0
    %126 = vmatpush1.msra.mxu0 0.0
    %127 = vmatprep.subr.mxu0 0.0
    %128 = vmatpush1.msra.mxu0 0.0
    %129 = vmatprep.subr.mxu0 0.0
    %130 = vmatpush1.msra.mxu0 0.0
    %131 = vmatprep.subr.mxu0 0.0
    %132 = vmatpush1.msra.mxu0 0.0
    %133 = vmatprep.subr.mxu0 0.0
    %134 = vmatpush1.msra.mxu0 0.0
    %135 = vmatprep.subr.mxu0 0.0
    %136 = vmatpush1.msra.mxu0 0.0
    %137 = vmatprep.subr.mxu0 0.0
    %138 = vmatpush1.msra.mxu0 0.0
    %139 = vmatprep.subr.mxu0 0.0
    %140 = vmatpush1.msra.mxu0 0.0
    %141 = vmatprep.subr.mxu0 0.0
    %142 = vmatpush1.msra.mxu0 0.0
    %143 = vmatprep.subr.mxu0 0.0
    %144 = vmatpush1.msra.mxu0 0.0
    %145 = vmatprep.subr.mxu0 0.0
    %146 = vmatpush1.msra.mxu0 0.0
    %147 = vmatprep.subr.mxu0 0.0
    %148 = vmatpush1.msra.mxu0 0.0
    %149 = vmatprep.subr.mxu0 0.0
    %150 = vmatpush1.msra.mxu0 0.0
    %151 = vmatprep.subr.mxu0 0.0
    %152 = vmatpush1.msra.mxu0 0.0
    %153 = vmatprep.subr.mxu0 0.0
    %154 = vmatpush1.msra.mxu0 0.0
    %155 = vmatprep.subr.mxu0 0.0
    %156 = vmatpush1.msra.mxu0 0.0
    %157 = vmatprep.subr.mxu0 0.0
    %158 = vmatpush1.msra.mxu0 0.0
    %159 = vmatprep.subr.mxu0 0.0
    %160 = vmatpush1.msra.mxu0 0.0
    %161 = vmatprep.mubr.f32.mxu0 0.0
    %162 = vmatmul.mubr.f32.gmra.mrb[0].mxu0 %v91
    %v163 = vpop.f32.mrb[0].mxu0
    %v164 = vadd.f32 %v77, %v163
    %v165 = vpop.f32.mrb[0].mxu0
    %166 = vdwg.mxu0
    %v168 = vsel %vm93, %v66, 0
    %170 = vmatprep.subr.mxu0 0.0
    %171 = vmatpush1.msra.mxu0 %v168
    %172 = vmatprep.subr.mxu0 0.0
    %173 = vmatpush1.msra.mxu0 0.0
    %174 = vmatprep.subr.mxu0 0.0
    %175 = vmatpush1.msra.mxu0 0.0
    %176 = vmatprep.subr.mxu0 0.0
    %177 = vmatpush1.msra.mxu0 0.0
    %178 = vmatprep.subr.mxu0 0.0
    %179 = vmatpush1.msra.mxu0 0.0
    %180 = vmatprep.subr.mxu0 0.0
    %181 = vmatpush1.msra.mxu0 0.0
    %182 = vmatprep.subr.mxu0 0.0
    %183 = vmatpush1.msra.mxu0 0.0
    %184 = vmatprep.subr.mxu0 0.0
    %185 = vmatpush1.msra.mxu0 0.0
    %186 = vmatprep.subr.mxu0 0.0
    %187 = vmatpush1.msra.mxu0 0.0
    %188 = vmatprep.subr.mxu0 0.0
    %189 = vmatpush1.msra.mxu0 0.0
    %190 = vmatprep.subr.mxu0 0.0
    %191 = vmatpush1.msra.mxu0 0.0
    %192 = vmatprep.subr.mxu0 0.0
    %193 = vmatpush1.msra.mxu0 0.0
    %194 = vmatprep.subr.mxu0 0.0
    %195 = vmatpush1.msra.mxu0 0.0
    %196 = vmatprep.subr.mxu0 0.0
    %197 = vmatpush1.msra.mxu0 0.0
    %198 = vmatprep.subr.mxu0 0.0
    %199 = vmatpush1.msra.mxu0 0.0
    %200 = vmatprep.subr.mxu0 0.0
    %201 = vmatpush1.msra.mxu0 0.0
    %202 = vmatprep.subr.mxu0 0.0
    %203 = vmatpush1.msra.mxu0 0.0
    %204 = vmatprep.subr.mxu0 0.0
    %205 = vmatpush1.msra.mxu0 0.0
    %206 = vmatprep.subr.mxu0 0.0
    %207 = vmatpush1.msra.mxu0 0.0
    %208 = vmatprep.subr.mxu0 0.0
    %209 = vmatpush1.msra.mxu0 0.0
    %210 = vmatprep.subr.mxu0 0.0
    %211 = vmatpush1.msra.mxu0 0.0
    %212 = vmatprep.subr.mxu0 0.0
    %213 = vmatpush1.msra.mxu0 0.0
    %214 = vmatprep.subr.mxu0 0.0
    %215 = vmatpush1.msra.mxu0 0.0
    %216 = vmatprep.subr.mxu0 0.0
    %217 = vmatpush1.msra.mxu0 0.0
    %218 = vmatprep.subr.mxu0 0.0
    %219 = vmatpush1.msra.mxu0 0.0
    %220 = vmatprep.subr.mxu0 0.0
    %221 = vmatpush1.msra.mxu0 0.0
    %222 = vmatprep.subr.mxu0 0.0
    %223 = vmatpush1.msra.mxu0 0.0
    %224 = vmatprep.subr.mxu0 0.0
    %225 = vmatpush1.msra.mxu0 0.0
    %226 = vmatprep.subr.mxu0 0.0
    %227 = vmatpush1.msra.mxu0 0.0
    %228 = vmatprep.subr.mxu0 0.0
    %229 = vmatpush1.msra.mxu0 0.0
    %230 = vmatprep.subr.mxu0 0.0
    %231 = vmatpush1.msra.mxu0 0.0
    %232 = vmatprep.subr.mxu0 0.0
    %233 = vmatpush1.msra.mxu0 0.0
    %234 = vmatprep.mubr.f32.mxu0 0.0
    %235 = vmatmul.mubr.f32.gmra.mrb[0].mxu0 %v91
    %v236 = vpop.f32.mrb[0].mxu0
    %v237 = vadd.f32 %v81, %v236
    %v238 = vpop.f32.mrb[0].mxu0
    %239 = vdwg.mxu0
    %v241 = vsel %vm93, %v67, 0
    %243 = vmatprep.subr.mxu0 0.0
    %244 = vmatpush1.msra.mxu0 %v241
    %245 = vmatprep.subr.mxu0 0.0
    %246 = vmatpush1.msra.mxu0 0.0
    %247 = vmatprep.subr.mxu0 0.0
    %248 = vmatpush1.msra.mxu0 0.0
    %249 = vmatprep.subr.mxu0 0.0
    %250 = vmatpush1.msra.mxu0 0.0
    %251 = vmatprep.subr.mxu0 0.0
    %252 = vmatpush1.msra.mxu0 0.0
    %253 = vmatprep.subr.mxu0 0.0
    %254 = vmatpush1.msra.mxu0 0.0
    %255 = vmatprep.subr.mxu0 0.0
    %256 = vmatpush1.msra.mxu0 0.0
    %257 = vmatprep.subr.mxu0 0.0
    %258 = vmatpush1.msra.mxu0 0.0
    %259 = vmatprep.subr.mxu0 0.0
    %260 = vmatpush1.msra.mxu0 0.0
    %261 = vmatprep.subr.mxu0 0.0
    %262 = vmatpush1.msra.mxu0 0.0
    %263 = vmatprep.subr.mxu0 0.0
    %264 = vmatpush1.msra.mxu0 0.0
    %265 = vmatprep.subr.mxu0 0.0
    %266 = vmatpush1.msra.mxu0 0.0
    %267 = vmatprep.subr.mxu0 0.0
    %268 = vmatpush1.msra.mxu0 0.0
    %269 = vmatprep.subr.mxu0 0.0
    %270 = vmatpush1.msra.mxu0 0.0
    %271 = vmatprep.subr.mxu0 0.0
    %272 = vmatpush1.msra.mxu0 0.0
    %273 = vmatprep.subr.mxu0 0.0
    %274 = vmatpush1.msra.mxu0 0.0
    %275 = vmatprep.subr.mxu0 0.0
    %276 = vmatpush1.msra.mxu0 0.0
    %277 = vmatprep.subr.mxu0 0.0
    %278 = vmatpush1.msra.mxu0 0.0
    %279 = vmatprep.subr.mxu0 0.0
    %280 = vmatpush1.msra.mxu0 0.0
    %281 = vmatprep.subr.mxu0 0.0
    %282 = vmatpush1.msra.mxu0 0.0
    %283 = vmatprep.subr.mxu0 0.0
    %284 = vmatpush1.msra.mxu0 0.0
    %285 = vmatprep.subr.mxu0 0.0
    %286 = vmatpush1.msra.mxu0 0.0
    %287 = vmatprep.subr.mxu0 0.0
    %288 = vmatpush1.msra.mxu0 0.0
    %289 = vmatprep.subr.mxu0 0.0
    %290 = vmatpush1.msra.mxu0 0.0
    %291 = vmatprep.subr.mxu0 0.0
    %292 = vmatpush1.msra.mxu0 0.0
    %293 = vmatprep.subr.mxu0 0.0
    %294 = vmatpush1.msra.mxu0 0.0
    %295 = vmatprep.subr.mxu0 0.0
    %296 = vmatpush1.msra.mxu0 0.0
    %297 = vmatprep.subr.mxu0 0.0
    %298 = vmatpush1.msra.mxu0 0.0
    %299 = vmatprep.subr.mxu0 0.0
    %300 = vmatpush1.msra.mxu0 0.0
    %301 = vmatprep.subr.mxu0 0.0
    %302 = vmatpush1.msra.mxu0 0.0
    %303 = vmatprep.subr.mxu0 0.0
    %304 = vmatpush1.msra.mxu0 0.0
    %305 = vmatprep.subr.mxu0 0.0
    %306 = vmatpush1.msra.mxu0 0.0
    %307 = vmatprep.mubr.f32.mxu0 0.0
    %308 = vmatmul.mubr.f32.gmra.mrb[0].mxu0 %v91
    %v309 = vpop.f32.mrb[0].mxu0
    %v310 = vadd.f32 %v85, %v309
    %v311 = vpop.f32.mrb[0].mxu0
    %312 = vdwg.mxu0
    %vm313 = vcmp.gt.f32.partialorder %v164, 0.0
    %vm314 = vcmp.gt.f32.partialorder %v237, 0.0
    %vm315 = vcmp.gt.f32.partialorder %v310, 0.0
    %v316 = vmin.f32 %v164, 0.0
    %v317 = vmin.f32 %v237, 0.0
    %v318 = vmin.f32 %v310, 0.0
    %v319 = vmul.f32 %v316, 1.442695
    %v320 = vpow.pop %v319
    %v321 = vmul.f32 %v317, 1.442695
    %v322 = vpow.pop %v321
    %v323 = vmul.f32 %v318, 1.442695
    %v324 = vpow.pop %v323
    %v325 = vsub.f32 %v320, 1.0
    %v326 = vsub.f32 %v322, 1.0
    %v327 = vsub.f32 %v324, 1.0
    %v328 = vsel %vm313, %v164, %v325
    %v329 = vsel %vm314, %v237, %v326
    %v330 = vsel %vm315, %v310, %v327
    %v331 = vld [vmem:[%s4] sm:$0xff]
    %v332 = vld [vmem:[%s4 + $0x8] sm:$0xff]
    %v333 = vld [vmem:[%s4 + $0x10] sm:$0xff]
    %v334 = vld [vmem:[%s4 + $0x18] sm:$0xff]
    %v335 = vld [vmem:[%s4 + $0x20] sm:$0xff]
    %v336 = vld [vmem:[%s4 + $0x28] sm:$0xff]
    %v337 = vld [vmem:[%s4 + $0x30] sm:$0xff]
    %v338 = vld [vmem:[%s4 + $0x38] sm:$0xff]
    %v339 = vld [vmem:[%s4 + $0x40] sm:$0xff]
    %v340 = vld [vmem:[%s4 + $0x48] sm:$0xff]
    %v341 = vld [vmem:[%s4 + $0x50] sm:$0xff]
    %v342 = vld [vmem:[%s4 + $0x58] sm:$0xff]
    %v343 = vld [vmem:[%s5] sm:$0x1]
    %v344 = vld [vmem:[%s5 + $0x1] sm:$0x1]
    %v345 = vld [vmem:[%s5 + $0x2] sm:$0x1]
    %v349 = vlaneseq
    %v350 = vshrl.u32 %v349, 7
    %v351 = vsub.s32 0, %v350
    %v352 = vrot.slane %v343, %v351
    %v353 = vlaneseq
    %v354 = vshrl.u32 %v353, 7
    %v355 = vsub.s32 0, %v354
    %v356 = vrot.slane %v344, %v355
    %v357 = vlaneseq
    %v358 = vshrl.u32 %v357, 7
    %v359 = vsub.s32 0, %v358
    %v360 = vrot.slane %v345, %v359
    %vm364 = vcmask 261120
    %v366 = vsel %vm364, %v328, 0
    %368 = vmatprep.subr.mxu0 0.0
    %369 = vmatpush1.msra.mxu0 %v331
    %370 = vmatprep.subr.mxu0 0.0
    %371 = vmatpush1.msra.mxu0 %v332
    %372 = vmatprep.subr.mxu0 0.0
    %373 = vmatpush1.msra.mxu0 %v333
    %374 = vmatprep.subr.mxu0 0.0
    %375 = vmatpush1.msra.mxu0 %v334
    %376 = vmatprep.subr.mxu0 0.0
    %377 = vmatpush1.msra.mxu0 0.0
    %378 = vmatprep.subr.mxu0 0.0
    %379 = vmatpush1.msra.mxu0 0.0
    %380 = vmatprep.subr.mxu0 0.0
    %381 = vmatpush1.msra.mxu0 0.0
    %382 = vmatprep.subr.mxu0 0.0
    %383 = vmatpush1.msra.mxu0 0.0
    %384 = vmatprep.subr.mxu0 0.0
    %385 = vmatpush1.msra.mxu0 0.0
    %386 = vmatprep.subr.mxu0 0.0
    %387 = vmatpush1.msra.mxu0 0.0
    %388 = vmatprep.subr.mxu0 0.0
    %389 = vmatpush1.msra.mxu0 0.0
    %390 = vmatprep.subr.mxu0 0.0
    %391 = vmatpush1.msra.mxu0 0.0
    %392 = vmatprep.subr.mxu0 0.0
    %393 = vmatpush1.msra.mxu0 0.0
    %394 = vmatprep.subr.mxu0 0.0
    %395 = vmatpush1.msra.mxu0 0.0
    %396 = vmatprep.subr.mxu0 0.0
    %397 = vmatpush1.msra.mxu0 0.0
    %398 = vmatprep.subr.mxu0 0.0
    %399 = vmatpush1.msra.mxu0 0.0
    %400 = vmatprep.subr.mxu0 0.0
    %401 = vmatpush1.msra.mxu0 0.0
    %402 = vmatprep.subr.mxu0 0.0
    %403 = vmatpush1.msra.mxu0 0.0
    %404 = vmatprep.subr.mxu0 0.0
    %405 = vmatpush1.msra.mxu0 0.0
    %406 = vmatprep.subr.mxu0 0.0
    %407 = vmatpush1.msra.mxu0 0.0
    %408 = vmatprep.subr.mxu0 0.0
    %409 = vmatpush1.msra.mxu0 0.0
    %410 = vmatprep.subr.mxu0 0.0
    %411 = vmatpush1.msra.mxu0 0.0
    %412 = vmatprep.subr.mxu0 0.0
    %413 = vmatpush1.msra.mxu0 0.0
    %414 = vmatprep.subr.mxu0 0.0
    %415 = vmatpush1.msra.mxu0 0.0
    %416 = vmatprep.subr.mxu0 0.0
    %417 = vmatpush1.msra.mxu0 0.0
    %418 = vmatprep.subr.mxu0 0.0
    %419 = vmatpush1.msra.mxu0 0.0
    %420 = vmatprep.subr.mxu0 0.0
    %421 = vmatpush1.msra.mxu0 0.0
    %422 = vmatprep.subr.mxu0 0.0
    %423 = vmatpush1.msra.mxu0 0.0
    %424 = vmatprep.subr.mxu0 0.0
    %425 = vmatpush1.msra.mxu0 0.0
    %426 = vmatprep.subr.mxu0 0.0
    %427 = vmatpush1.msra.mxu0 0.0
    %428 = vmatprep.subr.mxu0 0.0
    %429 = vmatpush1.msra.mxu0 0.0
    %430 = vmatprep.subr.mxu0 0.0
    %431 = vmatpush1.msra.mxu0 0.0
    %432 = vmatprep.mubr.f32.mxu0 0.0
    %433 = vmatmul.mubr.f32.gmra.mrb[0].mxu0 %v366
    %v434 = vpop.f32.mrb[0].mxu0
    %v435 = vadd.f32 %v352, %v434
    %v436 = vpop.f32.mrb[0].mxu0
    %437 = vdwg.mxu0
    %v439 = vsel %vm364, %v329, 0
    %441 = vmatprep.subr.mxu0 0.0
    %442 = vmatpush1.msra.mxu0 %v335
    %443 = vmatprep.subr.mxu0 0.0
    %444 = vmatpush1.msra.mxu0 %v336
    %445 = vmatprep.subr.mxu0 0.0
    %446 = vmatpush1.msra.mxu0 %v337
    %447 = vmatprep.subr.mxu0 0.0
    %448 = vmatpush1.msra.mxu0 %v338
    %449 = vmatprep.subr.mxu0 0.0
    %450 = vmatpush1.msra.mxu0 0.0
    %451 = vmatprep.subr.mxu0 0.0
    %452 = vmatpush1.msra.mxu0 0.0
    %453 = vmatprep.subr.mxu0 0.0
    %454 = vmatpush1.msra.mxu0 0.0
    %455 = vmatprep.subr.mxu0 0.0
    %456 = vmatpush1.msra.mxu0 0.0
    %457 = vmatprep.subr.mxu0 0.0
    %458 = vmatpush1.msra.mxu0 0.0
    %459 = vmatprep.subr.mxu0 0.0
    %460 = vmatpush1.msra.mxu0 0.0
    %461 = vmatprep.subr.mxu0 0.0
    %462 = vmatpush1.msra.mxu0 0.0
    %463 = vmatprep.subr.mxu0 0.0
    %464 = vmatpush1.msra.mxu0 0.0
    %465 = vmatprep.subr.mxu0 0.0
    %466 = vmatpush1.msra.mxu0 0.0
    %467 = vmatprep.subr.mxu0 0.0
    %468 = vmatpush1.msra.mxu0 0.0
    %469 = vmatprep.subr.mxu0 0.0
    %470 = vmatpush1.msra.mxu0 0.0
    %471 = vmatprep.subr.mxu0 0.0
    %472 = vmatpush1.msra.mxu0 0.0
    %473 = vmatprep.subr.mxu0 0.0
    %474 = vmatpush1.msra.mxu0 0.0
    %475 = vmatprep.subr.mxu0 0.0
    %476 = vmatpush1.msra.mxu0 0.0
    %477 = vmatprep.subr.mxu0 0.0
    %478 = vmatpush1.msra.mxu0 0.0
    %479 = vmatprep.subr.mxu0 0.0
    %480 = vmatpush1.msra.mxu0 0.0
    %481 = vmatprep.subr.mxu0 0.0
    %482 = vmatpush1.msra.mxu0 0.0
    %483 = vmatprep.subr.mxu0 0.0
    %484 = vmatpush1.msra.mxu0 0.0
    %485 = vmatprep.subr.mxu0 0.0
    %486 = vmatpush1.msra.mxu0 0.0
    %487 = vmatprep.subr.mxu0 0.0
    %488 = vmatpush1.msra.mxu0 0.0
    %489 = vmatprep.subr.mxu0 0.0
    %490 = vmatpush1.msra.mxu0 0.0
    %491 = vmatprep.subr.mxu0 0.0
    %492 = vmatpush1.msra.mxu0 0.0
    %493 = vmatprep.subr.mxu0 0.0
    %494 = vmatpush1.msra.mxu0 0.0
    %495 = vmatprep.subr.mxu0 0.0
    %496 = vmatpush1.msra.mxu0 0.0
    %497 = vmatprep.subr.mxu0 0.0
    %498 = vmatpush1.msra.mxu0 0.0
    %499 = vmatprep.subr.mxu0 0.0
    %500 = vmatpush1.msra.mxu0 0.0
    %501 = vmatprep.subr.mxu0 0.0
    %502 = vmatpush1.msra.mxu0 0.0
    %503 = vmatprep.subr.mxu0 0.0
    %504 = vmatpush1.msra.mxu0 0.0
    %505 = vmatprep.mubr.f32.mxu0 0.0
    %506 = vmatmul.mubr.f32.gmra.mrb[0].mxu0 %v439
    %v507 = vpop.f32.mrb[0].mxu0
    %v508 = vadd.f32 %v356, %v507
    %v509 = vpop.f32.mrb[0].mxu0
    %510 = vdwg.mxu0
    %v512 = vsel %vm364, %v330, 0
    %514 = vmatprep.subr.mxu0 0.0
    %515 = vmatpush1.msra.mxu0 %v339
    %516 = vmatprep.subr.mxu0 0.0
    %517 = vmatpush1.msra.mxu0 %v340
    %518 = vmatprep.subr.mxu0 0.0
    %519 = vmatpush1.msra.mxu0 %v341
    %520 = vmatprep.subr.mxu0 0.0
    %521 = vmatpush1.msra.mxu0 %v342
    %522 = vmatprep.subr.mxu0 0.0
    %523 = vmatpush1.msra.mxu0 0.0
    %524 = vmatprep.subr.mxu0 0.0
    %525 = vmatpush1.msra.mxu0 0.0
    %526 = vmatprep.subr.mxu0 0.0
    %527 = vmatpush1.msra.mxu0 0.0
    %528 = vmatprep.subr.mxu0 0.0
    %529 = vmatpush1.msra.mxu0 0.0
    %530 = vmatprep.subr.mxu0 0.0
    %531 = vmatpush1.msra.mxu0 0.0
    %532 = vmatprep.subr.mxu0 0.0
    %533 = vmatpush1.msra.mxu0 0.0
    %534 = vmatprep.subr.mxu0 0.0
    %535 = vmatpush1.msra.mxu0 0.0
    %536 = vmatprep.subr.mxu0 0.0
    %537 = vmatpush1.msra.mxu0 0.0
    %538 = vmatprep.subr.mxu0 0.0
    %539 = vmatpush1.msra.mxu0 0.0
    %540 = vmatprep.subr.mxu0 0.0
    %541 = vmatpush1.msra.mxu0 0.0
    %542 = vmatprep.subr.mxu0 0.0
    %543 = vmatpush1.msra.mxu0 0.0
    %544 = vmatprep.subr.mxu0 0.0
    %545 = vmatpush1.msra.mxu0 0.0
    %546 = vmatprep.subr.mxu0 0.0
    %547 = vmatpush1.msra.mxu0 0.0
    %548 = vmatprep.subr.mxu0 0.0
    %549 = vmatpush1.msra.mxu0 0.0
    %550 = vmatprep.subr.mxu0 0.0
    %551 = vmatpush1.msra.mxu0 0.0
    %552 = vmatprep.subr.mxu0 0.0
    %553 = vmatpush1.msra.mxu0 0.0
    %554 = vmatprep.subr.mxu0 0.0
    %555 = vmatpush1.msra.mxu0 0.0
    %556 = vmatprep.subr.mxu0 0.0
    %557 = vmatpush1.msra.mxu0 0.0
    %558 = vmatprep.subr.mxu0 0.0
    %559 = vmatpush1.msra.mxu0 0.0
    %560 = vmatprep.subr.mxu0 0.0
    %561 = vmatpush1.msra.mxu0 0.0
    %562 = vmatprep.subr.mxu0 0.0
    %563 = vmatpush1.msra.mxu0 0.0
    %564 = vmatprep.subr.mxu0 0.0
    %565 = vmatpush1.msra.mxu0 0.0
    %566 = vmatprep.subr.mxu0 0.0
    %567 = vmatpush1.msra.mxu0 0.0
    %568 = vmatprep.subr.mxu0 0.0
    %569 = vmatpush1.msra.mxu0 0.0
    %570 = vmatprep.subr.mxu0 0.0
    %571 = vmatpush1.msra.mxu0 0.0
    %572 = vmatprep.subr.mxu0 0.0
    %573 = vmatpush1.msra.mxu0 0.0
    %574 = vmatprep.subr.mxu0 0.0
    %575 = vmatpush1.msra.mxu0 0.0
    %576 = vmatprep.subr.mxu0 0.0
    %577 = vmatpush1.msra.mxu0 0.0
    %578 = vmatprep.mubr.f32.mxu0 0.0
    %579 = vmatmul.mubr.f32.gmra.mrb[0].mxu0 %v512
    %v580 = vpop.f32.mrb[0].mxu0
    %v581 = vadd.f32 %v360, %v580
    %v582 = vpop.f32.mrb[0].mxu0
    %583 = vdwg.mxu0
    %vm584 = vcmp.gt.f32.partialorder %v435, 0.0
    %vm585 = vcmp.gt.f32.partialorder %v508, 0.0
    %vm586 = vcmp.gt.f32.partialorder %v581, 0.0
    %v587 = vmin.f32 %v435, 0.0
    %v588 = vmin.f32 %v508, 0.0
    %v589 = vmin.f32 %v581, 0.0
    %v590 = vmul.f32 %v587, 1.442695
    %v591 = vpow.pop %v590
    %v592 = vmul.f32 %v588, 1.442695
    %v593 = vpow.pop %v592
    %v594 = vmul.f32 %v589, 1.442695
    %v595 = vpow.pop %v594
    %v596 = vsub.f32 %v591, 1.0
    %v597 = vsub.f32 %v593, 1.0
    %v598 = vsub.f32 %v595, 1.0
    %v599 = vsel %vm584, %v435, %v596
    %v600 = vsel %vm585, %v508, %v597
    %v601 = vsel %vm586, %v581, %v598
    %v602 = vld [vmem:[%s6] sm:$0xff]
    %v603 = vld [vmem:[%s6 + $0x8] sm:$0xff]
    %v604 = vld [vmem:[%s6 + $0x10] sm:$0xff]
    %v605 = vld [vmem:[%s6 + $0x18] sm:$0xff]
    %v606 = vld [vmem:[%s6 + $0x20] sm:$0xff]
    %v607 = vld [vmem:[%s6 + $0x28] sm:$0xff]
    %v608 = vld [vmem:[%s6 + $0x30] sm:$0xff]
    %v609 = vld [vmem:[%s6 + $0x38] sm:$0xff]
    %v610 = vld [vmem:[%s6 + $0x40] sm:$0xff]
    %v611 = vld [vmem:[%s6 + $0x48] sm:$0xff]
    %v612 = vld [vmem:[%s6 + $0x50] sm:$0xff]
    %v613 = vld [vmem:[%s6 + $0x58] sm:$0xff]
    %v614 = vld [vmem:[%s7] sm:$0x1]
    %v615 = vld [vmem:[%s7 + $0x1] sm:$0x1]
    %v616 = vld [vmem:[%s7 + $0x2] sm:$0x1]
    %v620 = vlaneseq
    %v621 = vshrl.u32 %v620, 7
    %v622 = vsub.s32 0, %v621
    %v623 = vrot.slane %v614, %v622
    %v624 = vlaneseq
    %v625 = vshrl.u32 %v624, 7
    %v626 = vsub.s32 0, %v625
    %v627 = vrot.slane %v615, %v626
    %v628 = vlaneseq
    %v629 = vshrl.u32 %v628, 7
    %v630 = vsub.s32 0, %v629
    %v631 = vrot.slane %v616, %v630
    %v636 = vsel %vm364, %v599, 0
    %638 = vmatprep.subr.mxu0 0.0
    %639 = vmatpush1.msra.mxu0 %v602
    %640 = vmatprep.subr.mxu0 0.0
    %641 = vmatpush1.msra.mxu0 %v603
    %642 = vmatprep.subr.mxu0 0.0
    %643 = vmatpush1.msra.mxu0 %v604
    %644 = vmatprep.subr.mxu0 0.0
    %645 = vmatpush1.msra.mxu0 %v605
    %646 = vmatprep.subr.mxu0 0.0
    %647 = vmatpush1.msra.mxu0 0.0
    %648 = vmatprep.subr.mxu0 0.0
    %649 = vmatpush1.msra.mxu0 0.0
    %650 = vmatprep.subr.mxu0 0.0
    %651 = vmatpush1.msra.mxu0 0.0
    %652 = vmatprep.subr.mxu0 0.0
    %653 = vmatpush1.msra.mxu0 0.0
    %654 = vmatprep.subr.mxu0 0.0
    %655 = vmatpush1.msra.mxu0 0.0
    %656 = vmatprep.subr.mxu0 0.0
    %657 = vmatpush1.msra.mxu0 0.0
    %658 = vmatprep.subr.mxu0 0.0
    %659 = vmatpush1.msra.mxu0 0.0
    %660 = vmatprep.subr.mxu0 0.0
    %661 = vmatpush1.msra.mxu0 0.0
    %662 = vmatprep.subr.mxu0 0.0
    %663 = vmatpush1.msra.mxu0 0.0
    %664 = vmatprep.subr.mxu0 0.0
    %665 = vmatpush1.msra.mxu0 0.0
    %666 = vmatprep.subr.mxu0 0.0
    %667 = vmatpush1.msra.mxu0 0.0
    %668 = vmatprep.subr.mxu0 0.0
    %669 = vmatpush1.msra.mxu0 0.0
    %670 = vmatprep.subr.mxu0 0.0
    %671 = vmatpush1.msra.mxu0 0.0
    %672 = vmatprep.subr.mxu0 0.0
    %673 = vmatpush1.msra.mxu0 0.0
    %674 = vmatprep.subr.mxu0 0.0
    %675 = vmatpush1.msra.mxu0 0.0
    %676 = vmatprep.subr.mxu0 0.0
    %677 = vmatpush1.msra.mxu0 0.0
    %678 = vmatprep.subr.mxu0 0.0
    %679 = vmatpush1.msra.mxu0 0.0
    %680 = vmatprep.subr.mxu0 0.0
    %681 = vmatpush1.msra.mxu0 0.0
    %682 = vmatprep.subr.mxu0 0.0
    %683 = vmatpush1.msra.mxu0 0.0
    %684 = vmatprep.subr.mxu0 0.0
    %685 = vmatpush1.msra.mxu0 0.0
    %686 = vmatprep.subr.mxu0 0.0
    %687 = vmatpush1.msra.mxu0 0.0
    %688 = vmatprep.subr.mxu0 0.0
    %689 = vmatpush1.msra.mxu0 0.0
    %690 = vmatprep.subr.mxu0 0.0
    %691 = vmatpush1.msra.mxu0 0.0
    %692 = vmatprep.subr.mxu0 0.0
    %693 = vmatpush1.msra.mxu0 0.0
    %694 = vmatprep.subr.mxu0 0.0
    %695 = vmatpush1.msra.mxu0 0.0
    %696 = vmatprep.subr.mxu0 0.0
    %697 = vmatpush1.msra.mxu0 0.0
    %698 = vmatprep.subr.mxu0 0.0
    %699 = vmatpush1.msra.mxu0 0.0
    %700 = vmatprep.subr.mxu0 0.0
    %701 = vmatpush1.msra.mxu0 0.0
    %702 = vmatprep.mubr.f32.mxu0 0.0
    %703 = vmatmul.mubr.f32.gmra.mrb[0].mxu0 %v636
    %v704 = vpop.f32.mrb[0].mxu0
    %v705 = vadd.f32 %v623, %v704
    %v706 = vpop.f32.mrb[0].mxu0
    %707 = vdwg.mxu0
    %v709 = vsel %vm364, %v600, 0
    %711 = vmatprep.subr.mxu0 0.0
    %712 = vmatpush1.msra.mxu0 %v606
    %713 = vmatprep.subr.mxu0 0.0
    %714 = vmatpush1.msra.mxu0 %v607
    %715 = vmatprep.subr.mxu0 0.0
    %716 = vmatpush1.msra.mxu0 %v608
    %717 = vmatprep.subr.mxu0 0.0
    %718 = vmatpush1.msra.mxu0 %v609
    %719 = vmatprep.subr.mxu0 0.0
    %720 = vmatpush1.msra.mxu0 0.0
    %721 = vmatprep.subr.mxu0 0.0
    %722 = vmatpush1.msra.mxu0 0.0
    %723 = vmatprep.subr.mxu0 0.0
    %724 = vmatpush1.msra.mxu0 0.0
    %725 = vmatprep.subr.mxu0 0.0
    %726 = vmatpush1.msra.mxu0 0.0
    %727 = vmatprep.subr.mxu0 0.0
    %728 = vmatpush1.msra.mxu0 0.0
    %729 = vmatprep.subr.mxu0 0.0
    %730 = vmatpush1.msra.mxu0 0.0
    %731 = vmatprep.subr.mxu0 0.0
    %732 = vmatpush1.msra.mxu0 0.0
    %733 = vmatprep.subr.mxu0 0.0
    %734 = vmatpush1.msra.mxu0 0.0
    %735 = vmatprep.subr.mxu0 0.0
    %736 = vmatpush1.msra.mxu0 0.0
    %737 = vmatprep.subr.mxu0 0.0
    %738 = vmatpush1.msra.mxu0 0.0
    %739 = vmatprep.subr.mxu0 0.0
    %740 = vmatpush1.msra.mxu0 0.0
    %741 = vmatprep.subr.mxu0 0.0
    %742 = vmatpush1.msra.mxu0 0.0
    %743 = vmatprep.subr.mxu0 0.0
    %744 = vmatpush1.msra.mxu0 0.0
    %745 = vmatprep.subr.mxu0 0.0
    %746 = vmatpush1.msra.mxu0 0.0
    %747 = vmatprep.subr.mxu0 0.0
    %748 = vmatpush1.msra.mxu0 0.0
    %749 = vmatprep.subr.mxu0 0.0
    %750 = vmatpush1.msra.mxu0 0.0
    %751 = vmatprep.subr.mxu0 0.0
    %752 = vmatpush1.msra.mxu0 0.0
    %753 = vmatprep.subr.mxu0 0.0
    %754 = vmatpush1.msra.mxu0 0.0
    %755 = vmatprep.subr.mxu0 0.0
    %756 = vmatpush1.msra.mxu0 0.0
    %757 = vmatprep.subr.mxu0 0.0
    %758 = vmatpush1.msra.mxu0 0.0
    %759 = vmatprep.subr.mxu0 0.0
    %760 = vmatpush1.msra.mxu0 0.0
    %761 = vmatprep.subr.mxu0 0.0
    %762 = vmatpush1.msra.mxu0 0.0
    %763 = vmatprep.subr.mxu0 0.0
    %764 = vmatpush1.msra.mxu0 0.0
    %765 = vmatprep.subr.mxu0 0.0
    %766 = vmatpush1.msra.mxu0 0.0
    %767 = vmatprep.subr.mxu0 0.0
    %768 = vmatpush1.msra.mxu0 0.0
    %769 = vmatprep.subr.mxu0 0.0
    %770 = vmatpush1.msra.mxu0 0.0
    %771 = vmatprep.subr.mxu0 0.0
    %772 = vmatpush1.msra.mxu0 0.0
    %773 = vmatprep.subr.mxu0 0.0
    %774 = vmatpush1.msra.mxu0 0.0
    %775 = vmatprep.mubr.f32.mxu0 0.0
    %776 = vmatmul.mubr.f32.gmra.mrb[0].mxu0 %v709
    %v777 = vpop.f32.mrb[0].mxu0
    %v778 = vadd.f32 %v627, %v777
    %v779 = vpop.f32.mrb[0].mxu0
    %780 = vdwg.mxu0
    %v782 = vsel %vm364, %v601, 0
    %784 = vmatprep.subr.mxu0 0.0
    %785 = vmatpush1.msra.mxu0 %v610
    %786 = vmatprep.subr.mxu0 0.0
    %787 = vmatpush1.msra.mxu0 %v611
    %788 = vmatprep.subr.mxu0 0.0
    %789 = vmatpush1.msra.mxu0 %v612
    %790 = vmatprep.subr.mxu0 0.0
    %791 = vmatpush1.msra.mxu0 %v613
    %792 = vmatprep.subr.mxu0 0.0
    %793 = vmatpush1.msra.mxu0 0.0
    %794 = vmatprep.subr.mxu0 0.0
    %795 = vmatpush1.msra.mxu0 0.0
    %796 = vmatprep.subr.mxu0 0.0
    %797 = vmatpush1.msra.mxu0 0.0
    %798 = vmatprep.subr.mxu0 0.0
    %799 = vmatpush1.msra.mxu0 0.0
    %800 = vmatprep.subr.mxu0 0.0
    %801 = vmatpush1.msra.mxu0 0.0
    %802 = vmatprep.subr.mxu0 0.0
    %803 = vmatpush1.msra.mxu0 0.0
    %804 = vmatprep.subr.mxu0 0.0
    %805 = vmatpush1.msra.mxu0 0.0
    %806 = vmatprep.subr.mxu0 0.0
    %807 = vmatpush1.msra.mxu0 0.0
    %808 = vmatprep.subr.mxu0 0.0
    %809 = vmatpush1.msra.mxu0 0.0
    %810 = vmatprep.subr.mxu0 0.0
    %811 = vmatpush1.msra.mxu0 0.0
    %812 = vmatprep.subr.mxu0 0.0
    %813 = vmatpush1.msra.mxu0 0.0
    %814 = vmatprep.subr.mxu0 0.0
    %815 = vmatpush1.msra.mxu0 0.0
    %816 = vmatprep.subr.mxu0 0.0
    %817 = vmatpush1.msra.mxu0 0.0
    %818 = vmatprep.subr.mxu0 0.0
    %819 = vmatpush1.msra.mxu0 0.0
    %820 = vmatprep.subr.mxu0 0.0
    %821 = vmatpush1.msra.mxu0 0.0
    %822 = vmatprep.subr.mxu0 0.0
    %823 = vmatpush1.msra.mxu0 0.0
    %824 = vmatprep.subr.mxu0 0.0
    %825 = vmatpush1.msra.mxu0 0.0
    %826 = vmatprep.subr.mxu0 0.0
    %827 = vmatpush1.msra.mxu0 0.0
    %828 = vmatprep.subr.mxu0 0.0
    %829 = vmatpush1.msra.mxu0 0.0
    %830 = vmatprep.subr.mxu0 0.0
    %831 = vmatpush1.msra.mxu0 0.0
    %832 = vmatprep.subr.mxu0 0.0
    %833 = vmatpush1.msra.mxu0 0.0
    %834 = vmatprep.subr.mxu0 0.0
    %835 = vmatpush1.msra.mxu0 0.0
    %836 = vmatprep.subr.mxu0 0.0
    %837 = vmatpush1.msra.mxu0 0.0
    %838 = vmatprep.subr.mxu0 0.0
    %839 = vmatpush1.msra.mxu0 0.0
    %840 = vmatprep.subr.mxu0 0.0
    %841 = vmatpush1.msra.mxu0 0.0
    %842 = vmatprep.subr.mxu0 0.0
    %843 = vmatpush1.msra.mxu0 0.0
    %844 = vmatprep.subr.mxu0 0.0
    %845 = vmatpush1.msra.mxu0 0.0
    %846 = vmatprep.subr.mxu0 0.0
    %847 = vmatpush1.msra.mxu0 0.0
    %848 = vmatprep.mubr.f32.mxu0 0.0
    %849 = vmatmul.mubr.f32.gmra.mrb[0].mxu0 %v782
    %v850 = vpop.f32.mrb[0].mxu0
    %v851 = vadd.f32 %v631, %v850
    %v852 = vpop.f32.mrb[0].mxu0
    %853 = vdwg.mxu0
    %v854 = vadd.f32 %v705, %v64
    %v855 = vadd.f32 %v778, %v64
    %v856 = vadd.f32 %v851, %v64
    %v857 = vsel %vm89, %v854, 0.0
    %858 = vadd.xlane.f32.xlu0 %v857
    %v859 = vpop.xlane.xlu0 %858
    %v860 = vsel %vm89, %v855, 0.0
    %861 = vadd.xlane.f32.xlu0 %v860
    %v862 = vpop.xlane.xlu0 %861
    %v863 = vsel %vm89, %v856, 0.0
    %864 = vadd.xlane.f32.xlu0 %v863
    %v865 = vpop.xlane.xlu0 %864
    %v866 = vrcp.pop 4.0
    %v867 = vmul.f32 %v859, %v866
    %v868 = vmul.f32 %v862, %v866
    %v869 = vmul.f32 %v865, %v866
    %v870 = vsub.f32 %v854, %v867
    %v871 = vsub.f32 %v855, %v868
    %v872 = vsub.f32 %v856, %v869
    %v873 = vmul.f32 %v870, %v870
    %v874 = vmul.f32 %v871, %v871
    %v875 = vmul.f32 %v872, %v872
    %v876 = vsel %vm89, %v873, 0.0
    %877 = vadd.xlane.f32.xlu0 %v876
    %v878 = vpop.xlane.xlu0 %877
    %v879 = vsel %vm89, %v874, 0.0
    %880 = vadd.xlane.f32.xlu0 %v879
    %v881 = vpop.xlane.xlu0 %880
    %v882 = vsel %vm89, %v875, 0.0
    %883 = vadd.xlane.f32.xlu0 %v882
    %v884 = vpop.xlane.xlu0 %883
    %v885 = vmul.f32 %v878, %v866
    %v886 = vmul.f32 %v881, %v866
    %v887 = vmul.f32 %v884, %v866
    %v888 = vadd.f32 %v885, 1e-05
    %v889 = vadd.f32 %v886, 1e-05
    %v890 = vadd.f32 %v887, 1e-05
    %v891 = vrsqrt.pop %v888
    %v892 = vrsqrt.pop %v889
    %v893 = vrsqrt.pop %v890
    %v894 = vmul.f32 %v870, %v891
    %v895 = vmul.f32 %v871, %v892
    %v896 = vmul.f32 %v872, %v893
    %v897 = vld [vmem:[%s8] sm:$0x1]
    %v898 = vld [vmem:[%s8 + $0x1] sm:$0x1]
    %v899 = vld [vmem:[%s8 + $0x2] sm:$0x1]
    %v903 = vlaneseq
    %v904 = vshrl.u32 %v903, 7
    %v905 = vsub.s32 0, %v904
    %v906 = vrot.slane %v897, %v905
    %v907 = vlaneseq
    %v908 = vshrl.u32 %v907, 7
    %v909 = vsub.s32 0, %v908
    %v910 = vrot.slane %v898, %v909
    %v911 = vlaneseq
    %v912 = vshrl.u32 %v911, 7
    %v913 = vsub.s32 0, %v912
    %v914 = vrot.slane %v899, %v913
    %v918 = vmul.f32 %v894, %v906
    %v919 = vmul.f32 %v895, %v910
    %v920 = vmul.f32 %v896, %v914
    %v921 = vld [vmem:[%s9] sm:$0x1]
    %v922 = vld [vmem:[%s9 + $0x1] sm:$0x1]
    %v923 = vld [vmem:[%s9 + $0x2] sm:$0x1]
    %v927 = vlaneseq
    %v928 = vshrl.u32 %v927, 7
    %v929 = vsub.s32 0, %v928
    %v930 = vrot.slane %v921, %v929
    %v931 = vlaneseq
    %v932 = vshrl.u32 %v931, 7
    %v933 = vsub.s32 0, %v932
    %v934 = vrot.slane %v922, %v933
    %v935 = vlaneseq
    %v936 = vshrl.u32 %v935, 7
    %v937 = vsub.s32 0, %v936
    %v938 = vrot.slane %v923, %v937
    %v942 = vadd.f32 %v918, %v930
    %v943 = vadd.f32 %v919, %v934
    %v944 = vadd.f32 %v920, %v938
    %v945 = vld [vmem:[%s11] sm:$0xf]
    %v946 = vld [vmem:[%s11 + $0x4] sm:$0xf]
    %v947 = vld [vmem:[%s11 + $0x8] sm:$0xf]
    %v949 = vsel %vm89, %v942, 0
    %v952 = vsel %vm93, %v945, 0
    %954 = vmatprep.subr.mxu0 0.0
    %955 = vmatpush1.msra.mxu0 %v952
    %956 = vmatprep.subr.mxu0 0.0
    %957 = vmatpush1.msra.mxu0 0.0
    %958 = vmatprep.subr.mxu0 0.0
    %959 = vmatpush1.msra.mxu0 0.0
    %960 = vmatprep.subr.mxu0 0.0
    %961 = vmatpush1.msra.mxu0 0.0
    %962 = vmatprep.subr.mxu0 0.0
    %963 = vmatpush1.msra.mxu0 0.0
    %964 = vmatprep.subr.mxu0 0.0
    %965 = vmatpush1.msra.mxu0 0.0
    %966 = vmatprep.subr.mxu0 0.0
    %967 = vmatpush1.msra.mxu0 0.0
    %968 = vmatprep.subr.mxu0 0.0
    %969 = vmatpush1.msra.mxu0 0.0
    %970 = vmatprep.subr.mxu0 0.0
    %971 = vmatpush1.msra.mxu0 0.0
    %972 = vmatprep.subr.mxu0 0.0
    %973 = vmatpush1.msra.mxu0 0.0
    %974 = vmatprep.subr.mxu0 0.0
    %975 = vmatpush1.msra.mxu0 0.0
    %976 = vmatprep.subr.mxu0 0.0
    %977 = vmatpush1.msra.mxu0 0.0
    %978 = vmatprep.subr.mxu0 0.0
    %979 = vmatpush1.msra.mxu0 0.0
    %980 = vmatprep.subr.mxu0 0.0
    %981 = vmatpush1.msra.mxu0 0.0
    %982 = vmatprep.subr.mxu0 0.0
    %983 = vmatpush1.msra.mxu0 0.0
    %984 = vmatprep.subr.mxu0 0.0
    %985 = vmatpush1.msra.mxu0 0.0
    %986 = vmatprep.subr.mxu0 0.0
    %987 = vmatpush1.msra.mxu0 0.0
    %988 = vmatprep.subr.mxu0 0.0
    %989 = vmatpush1.msra.mxu0 0.0
    %990 = vmatprep.subr.mxu0 0.0
    %991 = vmatpush1.msra.mxu0 0.0
    %992 = vmatprep.subr.mxu0 0.0
    %993 = vmatpush1.msra.mxu0 0.0
    %994 = vmatprep.subr.mxu0 0.0
    %995 = vmatpush1.msra.mxu0 0.0
    %996 = vmatprep.subr.mxu0 0.0
    %997 = vmatpush1.msra.mxu0 0.0
    %998 = vmatprep.subr.mxu0 0.0
    %999 = vmatpush1.msra.mxu0 0.0
    %1000 = vmatprep.subr.mxu0 0.0
    %1001 = vmatpush1.msra.mxu0 0.0
    %1002 = vmatprep.subr.mxu0 0.0
    %1003 = vmatpush1.msra.mxu0 0.0
    %1004 = vmatprep.subr.mxu0 0.0
    %1005 = vmatpush1.msra.mxu0 0.0
    %1006 = vmatprep.subr.mxu0 0.0
    %1007 = vmatpush1.msra.mxu0 0.0
    %1008 = vmatprep.subr.mxu0 0.0
    %1009 = vmatpush1.msra.mxu0 0.0
    %1010 = vmatprep.subr.mxu0 0.0
    %1011 = vmatpush1.msra.mxu0 0.0
    %1012 = vmatprep.subr.mxu0 0.0
    %1013 = vmatpush1.msra.mxu0 0.0
    %1014 = vmatprep.subr.mxu0 0.0
    %1015 = vmatpush1.msra.mxu0 0.0
    %1016 = vmatprep.subr.mxu0 0.0
    %1017 = vmatpush1.msra.mxu0 0.0
    %1018 = vmatprep.mubr.f32.mxu0 0.0
    %1019 = vmatmul.mubr.f32.gmra.mrb[0].mxu0 %v949
    %v1020 = vpop.f32.mrb[0].mxu0
    %v1021 = vadd.f32 0.0, %v1020
    %v1022 = vpop.f32.mrb[0].mxu0
    %1023 = vdwg.mxu0
    %v1025 = vsel %vm89, %v943, 0
    %v1028 = vsel %vm93, %v946, 0
    %1030 = vmatprep.subr.mxu0 0.0
    %1031 = vmatpush1.msra.mxu0 %v1028
    %1032 = vmatprep.subr.mxu0 0.0
    %1033 = vmatpush1.msra.mxu0 0.0
    %1034 = vmatprep.subr.mxu0 0.0
    %1035 = vmatpush1.msra.mxu0 0.0
    %1036 = vmatprep.subr.mxu0 0.0
    %1037 = vmatpush1.msra.mxu0 0.0
    %1038 = vmatprep.subr.mxu0 0.0
    %1039 = vmatpush1.msra.mxu0 0.0
    %1040 = vmatprep.subr.mxu0 0.0
    %1041 = vmatpush1.msra.mxu0 0.0
    %1042 = vmatprep.subr.mxu0 0.0
    %1043 = vmatpush1.msra.mxu0 0.0
    %1044 = vmatprep.subr.mxu0 0.0
    %1045 = vmatpush1.msra.mxu0 0.0
    %1046 = vmatprep.subr.mxu0 0.0
    %1047 = vmatpush1.msra.mxu0 0.0
    %1048 = vmatprep.subr.mxu0 0.0
    %1049 = vmatpush1.msra.mxu0 0.0
    %1050 = vmatprep.subr.mxu0 0.0
    %1051 = vmatpush1.msra.mxu0 0.0
    %1052 = vmatprep.subr.mxu0 0.0
    %1053 = vmatpush1.msra.mxu0 0.0
    %1054 = vmatprep.subr.mxu0 0.0
    %1055 = vmatpush1.msra.mxu0 0.0
    %1056 = vmatprep.subr.mxu0 0.0
    %1057 = vmatpush1.msra.mxu0 0.0
    %1058 = vmatprep.subr.mxu0 0.0
    %1059 = vmatpush1.msra.mxu0 0.0
    %1060 = vmatprep.subr.mxu0 0.0
    %1061 = vmatpush1.msra.mxu0 0.0
    %1062 = vmatprep.subr.mxu0 0.0
    %1063 = vmatpush1.msra.mxu0 0.0
    %1064 = vmatprep.subr.mxu0 0.0
    %1065 = vmatpush1.msra.mxu0 0.0
    %1066 = vmatprep.subr.mxu0 0.0
    %1067 = vmatpush1.msra.mxu0 0.0
    %1068 = vmatprep.subr.mxu0 0.0
    %1069 = vmatpush1.msra.mxu0 0.0
    %1070 = vmatprep.subr.mxu0 0.0
    %1071 = vmatpush1.msra.mxu0 0.0
    %1072 = vmatprep.subr.mxu0 0.0
    %1073 = vmatpush1.msra.mxu0 0.0
    %1074 = vmatprep.subr.mxu0 0.0
    %1075 = vmatpush1.msra.mxu0 0.0
    %1076 = vmatprep.subr.mxu0 0.0
    %1077 = vmatpush1.msra.mxu0 0.0
    %1078 = vmatprep.subr.mxu0 0.0
    %1079 = vmatpush1.msra.mxu0 0.0
    %1080 = vmatprep.subr.mxu0 0.0
    %1081 = vmatpush1.msra.mxu0 0.0
    %1082 = vmatprep.subr.mxu0 0.0
    %1083 = vmatpush1.msra.mxu0 0.0
    %1084 = vmatprep.subr.mxu0 0.0
    %1085 = vmatpush1.msra.mxu0 0.0
    %1086 = vmatprep.subr.mxu0 0.0
    %1087 = vmatpush1.msra.mxu0 0.0
    %1088 = vmatprep.subr.mxu0 0.0
    %1089 = vmatpush1.msra.mxu0 0.0
    %1090 = vmatprep.subr.mxu0 0.0
    %1091 = vmatpush1.msra.mxu0 0.0
    %1092 = vmatprep.subr.mxu0 0.0
    %1093 = vmatpush1.msra.mxu0 0.0
    %1094 = vmatprep.mubr.f32.mxu0 0.0
    %1095 = vmatmul.mubr.f32.gmra.mrb[0].mxu0 %v1025
    %v1096 = vpop.f32.mrb[0].mxu0
    %v1097 = vadd.f32 0.0, %v1096
    %v1098 = vpop.f32.mrb[0].mxu0
    %1099 = vdwg.mxu0
    %v1101 = vsel %vm89, %v944, 0
    %v1104 = vsel %vm93, %v947, 0
    %1106 = vmatprep.subr.mxu0 0.0
    %1107 = vmatpush1.msra.mxu0 %v1104
    %1108 = vmatprep.subr.mxu0 0.0
    %1109 = vmatpush1.msra.mxu0 0.0
    %1110 = vmatprep.subr.mxu0 0.0
    %1111 = vmatpush1.msra.mxu0 0.0
    %1112 = vmatprep.subr.mxu0 0.0
    %1113 = vmatpush1.msra.mxu0 0.0
    %1114 = vmatprep.subr.mxu0 0.0
    %1115 = vmatpush1.msra.mxu0 0.0
    %1116 = vmatprep.subr.mxu0 0.0
    %1117 = vmatpush1.msra.mxu0 0.0
    %1118 = vmatprep.subr.mxu0 0.0
    %1119 = vmatpush1.msra.mxu0 0.0
    %1120 = vmatprep.subr.mxu0 0.0
    %1121 = vmatpush1.msra.mxu0 0.0
    %1122 = vmatprep.subr.mxu0 0.0
    %1123 = vmatpush1.msra.mxu0 0.0
    %1124 = vmatprep.subr.mxu0 0.0
    %1125 = vmatpush1.msra.mxu0 0.0
    %1126 = vmatprep.subr.mxu0 0.0
    %1127 = vmatpush1.msra.mxu0 0.0
    %1128 = vmatprep.subr.mxu0 0.0
    %1129 = vmatpush1.msra.mxu0 0.0
    %1130 = vmatprep.subr.mxu0 0.0
    %1131 = vmatpush1.msra.mxu0 0.0
    %1132 = vmatprep.subr.mxu0 0.0
    %1133 = vmatpush1.msra.mxu0 0.0
    %1134 = vmatprep.subr.mxu0 0.0
    %1135 = vmatpush1.msra.mxu0 0.0
    %1136 = vmatprep.subr.mxu0 0.0
    %1137 = vmatpush1.msra.mxu0 0.0
    %1138 = vmatprep.subr.mxu0 0.0
    %1139 = vmatpush1.msra.mxu0 0.0
    %1140 = vmatprep.subr.mxu0 0.0
    %1141 = vmatpush1.msra.mxu0 0.0
    %1142 = vmatprep.subr.mxu0 0.0
    %1143 = vmatpush1.msra.mxu0 0.0
    %1144 = vmatprep.subr.mxu0 0.0
    %1145 = vmatpush1.msra.mxu0 0.0
    %1146 = vmatprep.subr.mxu0 0.0
    %1147 = vmatpush1.msra.mxu0 0.0
    %1148 = vmatprep.subr.mxu0 0.0
    %1149 = vmatpush1.msra.mxu0 0.0
    %1150 = vmatprep.subr.mxu0 0.0
    %1151 = vmatpush1.msra.mxu0 0.0
    %1152 = vmatprep.subr.mxu0 0.0
    %1153 = vmatpush1.msra.mxu0 0.0
    %1154 = vmatprep.subr.mxu0 0.0
    %1155 = vmatpush1.msra.mxu0 0.0
    %1156 = vmatprep.subr.mxu0 0.0
    %1157 = vmatpush1.msra.mxu0 0.0
    %1158 = vmatprep.subr.mxu0 0.0
    %1159 = vmatpush1.msra.mxu0 0.0
    %1160 = vmatprep.subr.mxu0 0.0
    %1161 = vmatpush1.msra.mxu0 0.0
    %1162 = vmatprep.subr.mxu0 0.0
    %1163 = vmatpush1.msra.mxu0 0.0
    %1164 = vmatprep.subr.mxu0 0.0
    %1165 = vmatpush1.msra.mxu0 0.0
    %1166 = vmatprep.subr.mxu0 0.0
    %1167 = vmatpush1.msra.mxu0 0.0
    %1168 = vmatprep.subr.mxu0 0.0
    %1169 = vmatpush1.msra.mxu0 0.0
    %1170 = vmatprep.mubr.f32.mxu0 0.0
    %1171 = vmatmul.mubr.f32.gmra.mrb[0].mxu0 %v1101
    %v1172 = vpop.f32.mrb[0].mxu0
    %v1173 = vadd.f32 0.0, %v1172
    %v1174 = vpop.f32.mrb[0].mxu0
    %1175 = vdwg.mxu0
    %v1176 = vld [vmem:[%s10] sm:$0xff]
    %v1177 = vld [vmem:[%s10 + $0x8] sm:$0xff]
    %vm1178 = vcmask 130048
    %v1180 = vsel %vm1178, %v63, 0
    %1182 = vmatprep.subr.mxu0 0.0
    %1183 = vmatpush1.msra.mxu0 %v1176
    %1184 = vmatprep.subr.mxu0 0.0
    %1185 = vmatpush1.msra.mxu0 %v1177
    %1186 = vmatprep.subr.mxu0 0.0
    %1187 = vmatpush1.msra.mxu0 0.0
    %1188 = vmatprep.subr.mxu0 0.0
    %1189 = vmatpush1.msra.mxu0 0.0
    %1190 = vmatprep.subr.mxu0 0.0
    %1191 = vmatpush1.msra.mxu0 0.0
    %1192 = vmatprep.subr.mxu0 0.0
    %1193 = vmatpush1.msra.mxu0 0.0
    %1194 = vmatprep.subr.mxu0 0.0
    %1195 = vmatpush1.msra.mxu0 0.0
    %1196 = vmatprep.subr.mxu0 0.0
    %1197 = vmatpush1.msra.mxu0 0.0
    %1198 = vmatprep.subr.mxu0 0.0
    %1199 = vmatpush1.msra.mxu0 0.0
    %1200 = vmatprep.subr.mxu0 0.0
    %1201 = vmatpush1.msra.mxu0 0.0
    %1202 = vmatprep.subr.mxu0 0.0
    %1203 = vmatpush1.msra.mxu0 0.0
    %1204 = vmatprep.subr.mxu0 0.0
    %1205 = vmatpush1.msra.mxu0 0.0
    %1206 = vmatprep.subr.mxu0 0.0
    %1207 = vmatpush1.msra.mxu0 0.0
    %1208 = vmatprep.subr.mxu0 0.0
    %1209 = vmatpush1.msra.mxu0 0.0
    %1210 = vmatprep.subr.mxu0 0.0
    %1211 = vmatpush1.msra.mxu0 0.0
    %1212 = vmatprep.subr.mxu0 0.0
    %1213 = vmatpush1.msra.mxu0 0.0
    %1214 = vmatprep.subr.mxu0 0.0
    %1215 = vmatpush1.msra.mxu0 0.0
    %1216 = vmatprep.subr.mxu0 0.0
    %1217 = vmatpush1.msra.mxu0 0.0
    %1218 = vmatprep.subr.mxu0 0.0
    %1219 = vmatpush1.msra.mxu0 0.0
    %1220 = vmatprep.subr.mxu0 0.0
    %1221 = vmatpush1.msra.mxu0 0.0
    %1222 = vmatprep.subr.mxu0 0.0
    %1223 = vmatpush1.msra.mxu0 0.0
    %1224 = vmatprep.subr.mxu0 0.0
    %1225 = vmatpush1.msra.mxu0 0.0
    %1226 = vmatprep.subr.mxu0 0.0
    %1227 = vmatpush1.msra.mxu0 0.0
    %1228 = vmatprep.subr.mxu0 0.0
    %1229 = vmatpush1.msra.mxu0 0.0
    %1230 = vmatprep.subr.mxu0 0.0
    %1231 = vmatpush1.msra.mxu0 0.0
    %1232 = vmatprep.subr.mxu0 0.0
    %1233 = vmatpush1.msra.mxu0 0.0
    %1234 = vmatprep.subr.mxu0 0.0
    %1235 = vmatpush1.msra.mxu0 0.0
    %1236 = vmatprep.subr.mxu0 0.0
    %1237 = vmatpush1.msra.mxu0 0.0
    %1238 = vmatprep.subr.mxu0 0.0
    %1239 = vmatpush1.msra.mxu0 0.0
    %1240 = vmatprep.subr.mxu0 0.0
    %1241 = vmatpush1.msra.mxu0 0.0
    %1242 = vmatprep.subr.mxu0 0.0
    %1243 = vmatpush1.msra.mxu0 0.0
    %1244 = vmatprep.subr.mxu0 0.0
    %1245 = vmatpush1.msra.mxu0 0.0
    %1246 = vmatprep.mubr.f32.mxu0 0.0
    %1247 = vmatmul.mubr.f32.gmra.mrb[0].mxu0 %v1180
    %v1248 = vpop.f32.mrb[0].mxu0
    %v1249 = vadd.f32 %v1021, %v1248
    %v1250 = vpop.f32.mrb[0].mxu0
    %1251 = vdwg.mxu0
    %v1252 = vld [vmem:[%s12] sm:$0x1]
    %v1254 = vlaneseq
    %v1255 = vshrl.u32 %v1254, 7
    %v1256 = vsub.s32 0, %v1255
    %v1257 = vrot.slane %v1252, %v1256
    %v1259 = vadd.f32 %v1249, %v1257
    %v1260 = vmax.f32 %v1259, 0.0
    %v1261 = vld [vmem:[%s13] sm:$0xff]
    %v1262 = vld [vmem:[%s13 + $0x8] sm:$0xff]
    %v1263 = vld [vmem:[%s13 + $0x10] sm:$0xff]
    %v1264 = vld [vmem:[%s13 + $0x18] sm:$0xff]
    %v1265 = vld [vmem:[%s14] sm:$0x1]
    %v1267 = vlaneseq
    %v1268 = vshrl.u32 %v1267, 7
    %v1269 = vsub.s32 0, %v1268
    %v1270 = vrot.slane %v1265, %v1269
    %v1273 = vsel %vm364, %v1260, 0
    %1275 = vmatprep.subr.mxu0 0.0
    %1276 = vmatpush1.msra.mxu0 %v1261
    %1277 = vmatprep.subr.mxu0 0.0
    %1278 = vmatpush1.msra.mxu0 %v1262
    %1279 = vmatprep.subr.mxu0 0.0
    %1280 = vmatpush1.msra.mxu0 %v1263
    %1281 = vmatprep.subr.mxu0 0.0
    %1282 = vmatpush1.msra.mxu0 %v1264
    %1283 = vmatprep.subr.mxu0 0.0
    %1284 = vmatpush1.msra.mxu0 0.0
    %1285 = vmatprep.subr.mxu0 0.0
    %1286 = vmatpush1.msra.mxu0 0.0
    %1287 = vmatprep.subr.mxu0 0.0
    %1288 = vmatpush1.msra.mxu0 0.0
    %1289 = vmatprep.subr.mxu0 0.0
    %1290 = vmatpush1.msra.mxu0 0.0
    %1291 = vmatprep.subr.mxu0 0.0
    %1292 = vmatpush1.msra.mxu0 0.0
    %1293 = vmatprep.subr.mxu0 0.0
    %1294 = vmatpush1.msra.mxu0 0.0
    %1295 = vmatprep.subr.mxu0 0.0
    %1296 = vmatpush1.msra.mxu0 0.0
    %1297 = vmatprep.subr.mxu0 0.0
    %1298 = vmatpush1.msra.mxu0 0.0
    %1299 = vmatprep.subr.mxu0 0.0
    %1300 = vmatpush1.msra.mxu0 0.0
    %1301 = vmatprep.subr.mxu0 0.0
    %1302 = vmatpush1.msra.mxu0 0.0
    %1303 = vmatprep.subr.mxu0 0.0
    %1304 = vmatpush1.msra.mxu0 0.0
    %1305 = vmatprep.subr.mxu0 0.0
    %1306 = vmatpush1.msra.mxu0 0.0
    %1307 = vmatprep.subr.mxu0 0.0
    %1308 = vmatpush1.msra.mxu0 0.0
    %1309 = vmatprep.subr.mxu0 0.0
    %1310 = vmatpush1.msra.mxu0 0.0
    %1311 = vmatprep.subr.mxu0 0.0
    %1312 = vmatpush1.msra.mxu0 0.0
    %1313 = vmatprep.subr.mxu0 0.0
    %1314 = vmatpush1.msra.mxu0 0.0
    %1315 = vmatprep.subr.mxu0 0.0
    %1316 = vmatpush1.msra.mxu0 0.0
    %1317 = vmatprep.subr.mxu0 0.0
    %1318 = vmatpush1.msra.mxu0 0.0
    %1319 = vmatprep.subr.mxu0 0.0
    %1320 = vmatpush1.msra.mxu0 0.0
    %1321 = vmatprep.subr.mxu0 0.0
    %1322 = vmatpush1.msra.mxu0 0.0
    %1323 = vmatprep.subr.mxu0 0.0
    %1324 = vmatpush1.msra.mxu0 0.0
    %1325 = vmatprep.subr.mxu0 0.0
    %1326 = vmatpush1.msra.mxu0 0.0
    %1327 = vmatprep.subr.mxu0 0.0
    %1328 = vmatpush1.msra.mxu0 0.0
    %1329 = vmatprep.subr.mxu0 0.0
    %1330 = vmatpush1.msra.mxu0 0.0
    %1331 = vmatprep.subr.mxu0 0.0
    %1332 = vmatpush1.msra.mxu0 0.0
    %1333 = vmatprep.subr.mxu0 0.0
    %1334 = vmatpush1.msra.mxu0 0.0
    %1335 = vmatprep.subr.mxu0 0.0
    %1336 = vmatpush1.msra.mxu0 0.0
    %1337 = vmatprep.subr.mxu0 0.0
    %1338 = vmatpush1.msra.mxu0 0.0
    %1339 = vmatprep.mubr.f32.mxu0 0.0
    %1340 = vmatmul.mubr.f32.gmra.mrb[0].mxu0 %v1273
    %v1341 = vpop.f32.mrb[0].mxu0
    %v1342 = vadd.f32 %v1270, %v1341
    %v1343 = vpop.f32.mrb[0].mxu0
    %1344 = vdwg.mxu0
    %v1345 = vmax.f32 %v1342, 0.0
    %v1346 = vld [vmem:[%s15] sm:$0xff]
    %v1347 = vld [vmem:[%s15 + $0x8] sm:$0xff]
    %v1348 = vld [vmem:[%s15 + $0x10] sm:$0xff]
    %v1349 = vld [vmem:[%s15 + $0x18] sm:$0xff]
    %v1350 = vld [vmem:[%s16] sm:$0x1]
    %v1352 = vlaneseq
    %v1353 = vshrl.u32 %v1352, 7
    %v1354 = vsub.s32 0, %v1353
    %v1355 = vrot.slane %v1350, %v1354
    %v1358 = vsel %vm364, %v1345, 0
    %1360 = vmatprep.subr.mxu0 0.0
    %1361 = vmatpush1.msra.mxu0 %v1346
    %1362 = vmatprep.subr.mxu0 0.0
    %1363 = vmatpush1.msra.mxu0 %v1347
    %1364 = vmatprep.subr.mxu0 0.0
    %1365 = vmatpush1.msra.mxu0 %v1348
    %1366 = vmatprep.subr.mxu0 0.0
    %1367 = vmatpush1.msra.mxu0 %v1349
    %1368 = vmatprep.subr.mxu0 0.0
    %1369 = vmatpush1.msra.mxu0 0.0
    %1370 = vmatprep.subr.mxu0 0.0
    %1371 = vmatpush1.msra.mxu0 0.0
    %1372 = vmatprep.subr.mxu0 0.0
    %1373 = vmatpush1.msra.mxu0 0.0
    %1374 = vmatprep.subr.mxu0 0.0
    %1375 = vmatpush1.msra.mxu0 0.0
    %1376 = vmatprep.subr.mxu0 0.0
    %1377 = vmatpush1.msra.mxu0 0.0
    %1378 = vmatprep.subr.mxu0 0.0
    %1379 = vmatpush1.msra.mxu0 0.0
    %1380 = vmatprep.subr.mxu0 0.0
    %1381 = vmatpush1.msra.mxu0 0.0
    %1382 = vmatprep.subr.mxu0 0.0
    %1383 = vmatpush1.msra.mxu0 0.0
    %1384 = vmatprep.subr.mxu0 0.0
    %1385 = vmatpush1.msra.mxu0 0.0
    %1386 = vmatprep.subr.mxu0 0.0
    %1387 = vmatpush1.msra.mxu0 0.0
    %1388 = vmatprep.subr.mxu0 0.0
    %1389 = vmatpush1.msra.mxu0 0.0
    %1390 = vmatprep.subr.mxu0 0.0
    %1391 = vmatpush1.msra.mxu0 0.0
    %1392 = vmatprep.subr.mxu0 0.0
    %1393 = vmatpush1.msra.mxu0 0.0
    %1394 = vmatprep.subr.mxu0 0.0
    %1395 = vmatpush1.msra.mxu0 0.0
    %1396 = vmatprep.subr.mxu0 0.0
    %1397 = vmatpush1.msra.mxu0 0.0
    %1398 = vmatprep.subr.mxu0 0.0
    %1399 = vmatpush1.msra.mxu0 0.0
    %1400 = vmatprep.subr.mxu0 0.0
    %1401 = vmatpush1.msra.mxu0 0.0
    %1402 = vmatprep.subr.mxu0 0.0
    %1403 = vmatpush1.msra.mxu0 0.0
    %1404 = vmatprep.subr.mxu0 0.0
    %1405 = vmatpush1.msra.mxu0 0.0
    %1406 = vmatprep.subr.mxu0 0.0
    %1407 = vmatpush1.msra.mxu0 0.0
    %1408 = vmatprep.subr.mxu0 0.0
    %1409 = vmatpush1.msra.mxu0 0.0
    %1410 = vmatprep.subr.mxu0 0.0
    %1411 = vmatpush1.msra.mxu0 0.0
    %1412 = vmatprep.subr.mxu0 0.0
    %1413 = vmatpush1.msra.mxu0 0.0
    %1414 = vmatprep.subr.mxu0 0.0
    %1415 = vmatpush1.msra.mxu0 0.0
    %1416 = vmatprep.subr.mxu0 0.0
    %1417 = vmatpush1.msra.mxu0 0.0
    %1418 = vmatprep.subr.mxu0 0.0
    %1419 = vmatpush1.msra.mxu0 0.0
    %1420 = vmatprep.subr.mxu0 0.0
    %1421 = vmatpush1.msra.mxu0 0.0
    %1422 = vmatprep.subr.mxu0 0.0
    %1423 = vmatpush1.msra.mxu0 0.0
    %1424 = vmatprep.mubr.f32.mxu0 0.0
    %1425 = vmatmul.mubr.f32.gmra.mrb[0].mxu0 %v1358
    %v1426 = vpop.f32.mrb[0].mxu0
    %v1427 = vadd.f32 %v1355, %v1426
    %v1428 = vpop.f32.mrb[0].mxu0
    %1429 = vdwg.mxu0
    %v1430 = vld [vmem:[%s17] sm:$0xff]
    %v1431 = vld [vmem:[%s17 + $0x8] sm:$0xff]
    %v1432 = vld [vmem:[%s17 + $0x10] sm:$0xff]
    %v1433 = vld [vmem:[%s17 + $0x18] sm:$0xff]
    %v1434 = vld [vmem:[%s18] sm:$0x1]
    %v1436 = vlaneseq
    %v1437 = vshrl.u32 %v1436, 7
    %v1438 = vsub.s32 0, %v1437
    %v1439 = vrot.slane %v1434, %v1438
    %1441 = vmatprep.subr.mxu0 0.0
    %1442 = vmatpush1.msra.mxu0 %v1430
    %1443 = vmatprep.subr.mxu0 0.0
    %1444 = vmatpush1.msra.mxu0 %v1431
    %1445 = vmatprep.subr.mxu0 0.0
    %1446 = vmatpush1.msra.mxu0 %v1432
    %1447 = vmatprep.subr.mxu0 0.0
    %1448 = vmatpush1.msra.mxu0 %v1433
    %1449 = vmatprep.subr.mxu0 0.0
    %1450 = vmatpush1.msra.mxu0 0.0
    %1451 = vmatprep.subr.mxu0 0.0
    %1452 = vmatpush1.msra.mxu0 0.0
    %1453 = vmatprep.subr.mxu0 0.0
    %1454 = vmatpush1.msra.mxu0 0.0
    %1455 = vmatprep.subr.mxu0 0.0
    %1456 = vmatpush1.msra.mxu0 0.0
    %1457 = vmatprep.subr.mxu0 0.0
    %1458 = vmatpush1.msra.mxu0 0.0
    %1459 = vmatprep.subr.mxu0 0.0
    %1460 = vmatpush1.msra.mxu0 0.0
    %1461 = vmatprep.subr.mxu0 0.0
    %1462 = vmatpush1.msra.mxu0 0.0
    %1463 = vmatprep.subr.mxu0 0.0
    %1464 = vmatpush1.msra.mxu0 0.0
    %1465 = vmatprep.subr.mxu0 0.0
    %1466 = vmatpush1.msra.mxu0 0.0
    %1467 = vmatprep.subr.mxu0 0.0
    %1468 = vmatpush1.msra.mxu0 0.0
    %1469 = vmatprep.subr.mxu0 0.0
    %1470 = vmatpush1.msra.mxu0 0.0
    %1471 = vmatprep.subr.mxu0 0.0
    %1472 = vmatpush1.msra.mxu0 0.0
    %1473 = vmatprep.subr.mxu0 0.0
    %1474 = vmatpush1.msra.mxu0 0.0
    %1475 = vmatprep.subr.mxu0 0.0
    %1476 = vmatpush1.msra.mxu0 0.0
    %1477 = vmatprep.subr.mxu0 0.0
    %1478 = vmatpush1.msra.mxu0 0.0
    %1479 = vmatprep.subr.mxu0 0.0
    %1480 = vmatpush1.msra.mxu0 0.0
    %1481 = vmatprep.subr.mxu0 0.0
    %1482 = vmatpush1.msra.mxu0 0.0
    %1483 = vmatprep.subr.mxu0 0.0
    %1484 = vmatpush1.msra.mxu0 0.0
    %1485 = vmatprep.subr.mxu0 0.0
    %1486 = vmatpush1.msra.mxu0 0.0
    %1487 = vmatprep.subr.mxu0 0.0
    %1488 = vmatpush1.msra.mxu0 0.0
    %1489 = vmatprep.subr.mxu0 0.0
    %1490 = vmatpush1.msra.mxu0 0.0
    %1491 = vmatprep.subr.mxu0 0.0
    %1492 = vmatpush1.msra.mxu0 0.0
    %1493 = vmatprep.subr.mxu0 0.0
    %1494 = vmatpush1.msra.mxu0 0.0
    %1495 = vmatprep.subr.mxu0 0.0
    %1496 = vmatpush1.msra.mxu0 0.0
    %1497 = vmatprep.subr.mxu0 0.0
    %1498 = vmatpush1.msra.mxu0 0.0
    %1499 = vmatprep.subr.mxu0 0.0
    %1500 = vmatpush1.msra.mxu0 0.0
    %1501 = vmatprep.subr.mxu0 0.0
    %1502 = vmatpush1.msra.mxu0 0.0
    %1503 = vmatprep.subr.mxu0 0.0
    %1504 = vmatpush1.msra.mxu0 0.0
    %1505 = vmatprep.mubr.f32.mxu0 0.0
    %1506 = vmatmul.mubr.f32.gmra.mrb[0].mxu0 %v1358
    %v1507 = vpop.f32.mrb[0].mxu0
    %v1508 = vadd.f32 %v1439, %v1507
    %v1509 = vpop.f32.mrb[0].mxu0
    %1510 = vdwg.mxu0
    %v1511 = vsub.f32 %v63, %v1427
    %v1512 = vadd.f32 %v1508, 0.0
    %s1513 = scalar_lea.vmem %s10, 16
    %v1514 = vld [vmem:[%s1513] sm:$0xff]
    %v1515 = vld [vmem:[%s1513 + $0x8] sm:$0xff]
    %v1517 = vsel %vm1178, %v1511, 0
    %1519 = vmatprep.subr.mxu0 0.0
    %1520 = vmatpush1.msra.mxu0 %v1514
    %1521 = vmatprep.subr.mxu0 0.0
    %1522 = vmatpush1.msra.mxu0 %v1515
    %1523 = vmatprep.subr.mxu0 0.0
    %1524 = vmatpush1.msra.mxu0 0.0
    %1525 = vmatprep.subr.mxu0 0.0
    %1526 = vmatpush1.msra.mxu0 0.0
    %1527 = vmatprep.subr.mxu0 0.0
    %1528 = vmatpush1.msra.mxu0 0.0
    %1529 = vmatprep.subr.mxu0 0.0
    %1530 = vmatpush1.msra.mxu0 0.0
    %1531 = vmatprep.subr.mxu0 0.0
    %1532 = vmatpush1.msra.mxu0 0.0
    %1533 = vmatprep.subr.mxu0 0.0
    %1534 = vmatpush1.msra.mxu0 0.0
    %1535 = vmatprep.subr.mxu0 0.0
    %1536 = vmatpush1.msra.mxu0 0.0
    %1537 = vmatprep.subr.mxu0 0.0
    %1538 = vmatpush1.msra.mxu0 0.0
    %1539 = vmatprep.subr.mxu0 0.0
    %1540 = vmatpush1.msra.mxu0 0.0
    %1541 = vmatprep.subr.mxu0 0.0
    %1542 = vmatpush1.msra.mxu0 0.0
    %1543 = vmatprep.subr.mxu0 0.0
    %1544 = vmatpush1.msra.mxu0 0.0
    %1545 = vmatprep.subr.mxu0 0.0
    %1546 = vmatpush1.msra.mxu0 0.0
    %1547 = vmatprep.subr.mxu0 0.0
    %1548 = vmatpush1.msra.mxu0 0.0
    %1549 = vmatprep.subr.mxu0 0.0
    %1550 = vmatpush1.msra.mxu0 0.0
    %1551 = vmatprep.subr.mxu0 0.0
    %1552 = vmatpush1.msra.mxu0 0.0
    %1553 = vmatprep.subr.mxu0 0.0
    %1554 = vmatpush1.msra.mxu0 0.0
    %1555 = vmatprep.subr.mxu0 0.0
    %1556 = vmatpush1.msra.mxu0 0.0
    %1557 = vmatprep.subr.mxu0 0.0
    %1558 = vmatpush1.msra.mxu0 0.0
    %1559 = vmatprep.subr.mxu0 0.0
    %1560 = vmatpush1.msra.mxu0 0.0
    %1561 = vmatprep.subr.mxu0 0.0
    %1562 = vmatpush1.msra.mxu0 0.0
    %1563 = vmatprep.subr.mxu0 0.0
    %1564 = vmatpush1.msra.mxu0 0.0
    %1565 = vmatprep.subr.mxu0 0.0
    %1566 = vmatpush1.msra.mxu0 0.0
    %1567 = vmatprep.subr.mxu0 0.0
    %1568 = vmatpush1.msra.mxu0 0.0
    %1569 = vmatprep.subr.mxu0 0.0
    %1570 = vmatpush1.msra.mxu0 0.0
    %1571 = vmatprep.subr.mxu0 0.0
    %1572 = vmatpush1.msra.mxu0 0.0
    %1573 = vmatprep.subr.mxu0 0.0
    %1574 = vmatpush1.msra.mxu0 0.0
    %1575 = vmatprep.subr.mxu0 0.0
    %1576 = vmatpush1.msra.mxu0 0.0
    %1577 = vmatprep.subr.mxu0 0.0
    %1578 = vmatpush1.msra.mxu0 0.0
    %1579 = vmatprep.subr.mxu0 0.0
    %1580 = vmatpush1.msra.mxu0 0.0
    %1581 = vmatprep.subr.mxu0 0.0
    %1582 = vmatpush1.msra.mxu0 0.0
    %1583 = vmatprep.mubr.f32.mxu0 0.0
    %1584 = vmatmul.mubr.f32.gmra.mrb[0].mxu0 %v1517
    %v1585 = vpop.f32.mrb[0].mxu0
    %v1586 = vadd.f32 %v1097, %v1585
    %v1587 = vpop.f32.mrb[0].mxu0
    %1588 = vdwg.mxu0
    %s1589 = scalar_lea.vmem %s12, 1
    %v1590 = vld [vmem:[%s1589] sm:$0x1]
    %v1592 = vlaneseq
    %v1593 = vshrl.u32 %v1592, 7
    %v1594 = vsub.s32 0, %v1593
    %v1595 = vrot.slane %v1590, %v1594
    %v1597 = vadd.f32 %v1586, %v1595
    %v1598 = vmax.f32 %v1597, 0.0
    %s1599 = scalar_lea.vmem %s13, 32
    %v1600 = vld [vmem:[%s1599] sm:$0xff]
    %v1601 = vld [vmem:[%s1599 + $0x8] sm:$0xff]
    %v1602 = vld [vmem:[%s1599 + $0x10] sm:$0xff]
    %v1603 = vld [vmem:[%s1599 + $0x18] sm:$0xff]
    %s1604 = scalar_lea.vmem %s14, 1
    %v1605 = vld [vmem:[%s1604] sm:$0x1]
    %v1607 = vlaneseq
    %v1608 = vshrl.u32 %v1607, 7
    %v1609 = vsub.s32 0, %v1608
    %v1610 = vrot.slane %v1605, %v1609
    %v1613 = vsel %vm364, %v1598, 0
    %1615 = vmatprep.subr.mxu0 0.0
    %1616 = vmatpush1.msra.mxu0 %v1600
    %1617 = vmatprep.subr.mxu0 0.0
    %1618 = vmatpush1.msra.mxu0 %v1601
    %1619 = vmatprep.subr.mxu0 0.0
    %1620 = vmatpush1.msra.mxu0 %v1602
    %1621 = vmatprep.subr.mxu0 0.0
    %1622 = vmatpush1.msra.mxu0 %v1603
    %1623 = vmatprep.subr.mxu0 0.0
    %1624 = vmatpush1.msra.mxu0 0.0
    %1625 = vmatprep.subr.mxu0 0.0
    %1626 = vmatpush1.msra.mxu0 0.0
    %1627 = vmatprep.subr.mxu0 0.0
    %1628 = vmatpush1.msra.mxu0 0.0
    %1629 = vmatprep.subr.mxu0 0.0
    %1630 = vmatpush1.msra.mxu0 0.0
    %1631 = vmatprep.subr.mxu0 0.0
    %1632 = vmatpush1.msra.mxu0 0.0
    %1633 = vmatprep.subr.mxu0 0.0
    %1634 = vmatpush1.msra.mxu0 0.0
    %1635 = vmatprep.subr.mxu0 0.0
    %1636 = vmatpush1.msra.mxu0 0.0
    %1637 = vmatprep.subr.mxu0 0.0
    %1638 = vmatpush1.msra.mxu0 0.0
    %1639 = vmatprep.subr.mxu0 0.0
    %1640 = vmatpush1.msra.mxu0 0.0
    %1641 = vmatprep.subr.mxu0 0.0
    %1642 = vmatpush1.msra.mxu0 0.0
    %1643 = vmatprep.subr.mxu0 0.0
    %1644 = vmatpush1.msra.mxu0 0.0
    %1645 = vmatprep.subr.mxu0 0.0
    %1646 = vmatpush1.msra.mxu0 0.0
    %1647 = vmatprep.subr.mxu0 0.0
    %1648 = vmatpush1.msra.mxu0 0.0
    %1649 = vmatprep.subr.mxu0 0.0
    %1650 = vmatpush1.msra.mxu0 0.0
    %1651 = vmatprep.subr.mxu0 0.0
    %1652 = vmatpush1.msra.mxu0 0.0
    %1653 = vmatprep.subr.mxu0 0.0
    %1654 = vmatpush1.msra.mxu0 0.0
    %1655 = vmatprep.subr.mxu0 0.0
    %1656 = vmatpush1.msra.mxu0 0.0
    %1657 = vmatprep.subr.mxu0 0.0
    %1658 = vmatpush1.msra.mxu0 0.0
    %1659 = vmatprep.subr.mxu0 0.0
    %1660 = vmatpush1.msra.mxu0 0.0
    %1661 = vmatprep.subr.mxu0 0.0
    %1662 = vmatpush1.msra.mxu0 0.0
    %1663 = vmatprep.subr.mxu0 0.0
    %1664 = vmatpush1.msra.mxu0 0.0
    %1665 = vmatprep.subr.mxu0 0.0
    %1666 = vmatpush1.msra.mxu0 0.0
    %1667 = vmatprep.subr.mxu0 0.0
    %1668 = vmatpush1.msra.mxu0 0.0
    %1669 = vmatprep.subr.mxu0 0.0
    %1670 = vmatpush1.msra.mxu0 0.0
    %1671 = vmatprep.subr.mxu0 0.0
    %1672 = vmatpush1.msra.mxu0 0.0
    %1673 = vmatprep.subr.mxu0 0.0
    %1674 = vmatpush1.msra.mxu0 0.0
    %1675 = vmatprep.subr.mxu0 0.0
    %1676 = vmatpush1.msra.mxu0 0.0
    %1677 = vmatprep.subr.mxu0 0.0
    %1678 = vmatpush1.msra.mxu0 0.0
    %1679 = vmatprep.mubr.f32.mxu0 0.0
    %1680 = vmatmul.mubr.f32.gmra.mrb[0].mxu0 %v1613
    %v1681 = vpop.f32.mrb[0].mxu0
    %v1682 = vadd.f32 %v1610, %v1681
    %v1683 = vpop.f32.mrb[0].mxu0
    %1684 = vdwg.mxu0
    %v1685 = vmax.f32 %v1682, 0.0
    %s1686 = scalar_lea.vmem %s15, 32
    %v1687 = vld [vmem:[%s1686] sm:$0xff]
    %v1688 = vld [vmem:[%s1686 + $0x8] sm:$0xff]
    %v1689 = vld [vmem:[%s1686 + $0x10] sm:$0xff]
    %v1690 = vld [vmem:[%s1686 + $0x18] sm:$0xff]
    %s1691 = scalar_lea.vmem %s16, 1
    %v1692 = vld [vmem:[%s1691] sm:$0x1]
    %v1694 = vlaneseq
    %v1695 = vshrl.u32 %v1694, 7
    %v1696 = vsub.s32 0, %v1695
    %v1697 = vrot.slane %v1692, %v1696
    %v1700 = vsel %vm364, %v1685, 0
    %1702 = vmatprep.subr.mxu0 0.0
    %1703 = vmatpush1.msra.mxu0 %v1687
    %1704 = vmatprep.subr.mxu0 0.0
    %1705 = vmatpush1.msra.mxu0 %v1688
    %1706 = vmatprep.subr.mxu0 0.0
    %1707 = vmatpush1.msra.mxu0 %v1689
    %1708 = vmatprep.subr.mxu0 0.0
    %1709 = vmatpush1.msra.mxu0 %v1690
    %1710 = vmatprep.subr.mxu0 0.0
    %1711 = vmatpush1.msra.mxu0 0.0
    %1712 = vmatprep.subr.mxu0 0.0
    %1713 = vmatpush1.msra.mxu0 0.0
    %1714 = vmatprep.subr.mxu0 0.0
    %1715 = vmatpush1.msra.mxu0 0.0
    %1716 = vmatprep.subr.mxu0 0.0
    %1717 = vmatpush1.msra.mxu0 0.0
    %1718 = vmatprep.subr.mxu0 0.0
    %1719 = vmatpush1.msra.mxu0 0.0
    %1720 = vmatprep.subr.mxu0 0.0
    %1721 = vmatpush1.msra.mxu0 0.0
    %1722 = vmatprep.subr.mxu0 0.0
    %1723 = vmatpush1.msra.mxu0 0.0
    %1724 = vmatprep.subr.mxu0 0.0
    %1725 = vmatpush1.msra.mxu0 0.0
    %1726 = vmatprep.subr.mxu0 0.0
    %1727 = vmatpush1.msra.mxu0 0.0
    %1728 = vmatprep.subr.mxu0 0.0
    %1729 = vmatpush1.msra.mxu0 0.0
    %1730 = vmatprep.subr.mxu0 0.0
    %1731 = vmatpush1.msra.mxu0 0.0
    %1732 = vmatprep.subr.mxu0 0.0
    %1733 = vmatpush1.msra.mxu0 0.0
    %1734 = vmatprep.subr.mxu0 0.0
    %1735 = vmatpush1.msra.mxu0 0.0
    %1736 = vmatprep.subr.mxu0 0.0
    %1737 = vmatpush1.msra.mxu0 0.0
    %1738 = vmatprep.subr.mxu0 0.0
    %1739 = vmatpush1.msra.mxu0 0.0
    %1740 = vmatprep.subr.mxu0 0.0
    %1741 = vmatpush1.msra.mxu0 0.0
    %1742 = vmatprep.subr.mxu0 0.0
    %1743 = vmatpush1.msra.mxu0 0.0
    %1744 = vmatprep.subr.mxu0 0.0
    %1745 = vmatpush1.msra.mxu0 0.0
    %1746 = vmatprep.subr.mxu0 0.0
    %1747 = vmatpush1.msra.mxu0 0.0
    %1748 = vmatprep.subr.mxu0 0.0
    %1749 = vmatpush1.msra.mxu0 0.0
    %1750 = vmatprep.subr.mxu0 0.0
    %1751 = vmatpush1.msra.mxu0 0.0
    %1752 = vmatprep.subr.mxu0 0.0
    %1753 = vmatpush1.msra.mxu0 0.0
    %1754 = vmatprep.subr.mxu0 0.0
    %1755 = vmatpush1.msra.mxu0 0.0
    %1756 = vmatprep.subr.mxu0 0.0
    %1757 = vmatpush1.msra.mxu0 0.0
    %1758 = vmatprep.subr.mxu0 0.0
    %1759 = vmatpush1.msra.mxu0 0.0
    %1760 = vmatprep.subr.mxu0 0.0
    %1761 = vmatpush1.msra.mxu0 0.0
    %1762 = vmatprep.subr.mxu0 0.0
    %1763 = vmatpush1.msra.mxu0 0.0
    %1764 = vmatprep.subr.mxu0 0.0
    %1765 = vmatpush1.msra.mxu0 0.0
    %1766 = vmatprep.mubr.f32.mxu0 0.0
    %1767 = vmatmul.mubr.f32.gmra.mrb[0].mxu0 %v1700
    %v1768 = vpop.f32.mrb[0].mxu0
    %v1769 = vadd.f32 %v1697, %v1768
    %v1770 = vpop.f32.mrb[0].mxu0
    %1771 = vdwg.mxu0
    %s1772 = scalar_lea.vmem %s17, 32
    %v1773 = vld [vmem:[%s1772] sm:$0xff]
    %v1774 = vld [vmem:[%s1772 + $0x8] sm:$0xff]
    %v1775 = vld [vmem:[%s1772 + $0x10] sm:$0xff]
    %v1776 = vld [vmem:[%s1772 + $0x18] sm:$0xff]
    %s1777 = scalar_lea.vmem %s18, 1
    %v1778 = vld [vmem:[%s1777] sm:$0x1]
    %v1780 = vlaneseq
    %v1781 = vshrl.u32 %v1780, 7
    %v1782 = vsub.s32 0, %v1781
    %v1783 = vrot.slane %v1778, %v1782
    %1785 = vmatprep.subr.mxu0 0.0
    %1786 = vmatpush1.msra.mxu0 %v1773
    %1787 = vmatprep.subr.mxu0 0.0
    %1788 = vmatpush1.msra.mxu0 %v1774
    %1789 = vmatprep.subr.mxu0 0.0
    %1790 = vmatpush1.msra.mxu0 %v1775
    %1791 = vmatprep.subr.mxu0 0.0
    %1792 = vmatpush1.msra.mxu0 %v1776
    %1793 = vmatprep.subr.mxu0 0.0
    %1794 = vmatpush1.msra.mxu0 0.0
    %1795 = vmatprep.subr.mxu0 0.0
    %1796 = vmatpush1.msra.mxu0 0.0
    %1797 = vmatprep.subr.mxu0 0.0
    %1798 = vmatpush1.msra.mxu0 0.0
    %1799 = vmatprep.subr.mxu0 0.0
    %1800 = vmatpush1.msra.mxu0 0.0
    %1801 = vmatprep.subr.mxu0 0.0
    %1802 = vmatpush1.msra.mxu0 0.0
    %1803 = vmatprep.subr.mxu0 0.0
    %1804 = vmatpush1.msra.mxu0 0.0
    %1805 = vmatprep.subr.mxu0 0.0
    %1806 = vmatpush1.msra.mxu0 0.0
    %1807 = vmatprep.subr.mxu0 0.0
    %1808 = vmatpush1.msra.mxu0 0.0
    %1809 = vmatprep.subr.mxu0 0.0
    %1810 = vmatpush1.msra.mxu0 0.0
    %1811 = vmatprep.subr.mxu0 0.0
    %1812 = vmatpush1.msra.mxu0 0.0
    %1813 = vmatprep.subr.mxu0 0.0
    %1814 = vmatpush1.msra.mxu0 0.0
    %1815 = vmatprep.subr.mxu0 0.0
    %1816 = vmatpush1.msra.mxu0 0.0
    %1817 = vmatprep.subr.mxu0 0.0
    %1818 = vmatpush1.msra.mxu0 0.0
    %1819 = vmatprep.subr.mxu0 0.0
    %1820 = vmatpush1.msra.mxu0 0.0
    %1821 = vmatprep.subr.mxu0 0.0
    %1822 = vmatpush1.msra.mxu0 0.0
    %1823 = vmatprep.subr.mxu0 0.0
    %1824 = vmatpush1.msra.mxu0 0.0
    %1825 = vmatprep.subr.mxu0 0.0
    %1826 = vmatpush1.msra.mxu0 0.0
    %1827 = vmatprep.subr.mxu0 0.0
    %1828 = vmatpush1.msra.mxu0 0.0
    %1829 = vmatprep.subr.mxu0 0.0
    %1830 = vmatpush1.msra.mxu0 0.0
    %1831 = vmatprep.subr.mxu0 0.0
    %1832 = vmatpush1.msra.mxu0 0.0
    %1833 = vmatprep.subr.mxu0 0.0
    %1834 = vmatpush1.msra.mxu0 0.0
    %1835 = vmatprep.subr.mxu0 0.0
    %1836 = vmatpush1.msra.mxu0 0.0
    %1837 = vmatprep.subr.mxu0 0.0
    %1838 = vmatpush1.msra.mxu0 0.0
    %1839 = vmatprep.subr.mxu0 0.0
    %1840 = vmatpush1.msra.mxu0 0.0
    %1841 = vmatprep.subr.mxu0 0.0
    %1842 = vmatpush1.msra.mxu0 0.0
    %1843 = vmatprep.subr.mxu0 0.0
    %1844 = vmatpush1.msra.mxu0 0.0
    %1845 = vmatprep.subr.mxu0 0.0
    %1846 = vmatpush1.msra.mxu0 0.0
    %1847 = vmatprep.subr.mxu0 0.0
    %1848 = vmatpush1.msra.mxu0 0.0
    %1849 = vmatprep.mubr.f32.mxu0 0.0
    %1850 = vmatmul.mubr.f32.gmra.mrb[0].mxu0 %v1700
    %v1851 = vpop.f32.mrb[0].mxu0
    %v1852 = vadd.f32 %v1783, %v1851
    %v1853 = vpop.f32.mrb[0].mxu0
    %1854 = vdwg.mxu0
    %v1855 = vsub.f32 %v1511, %v1769
    %v1856 = vadd.f32 %v1512, %v1852
    %s1857 = scalar_lea.vmem %s10, 32
    %v1858 = vld [vmem:[%s1857] sm:$0xff]
    %v1859 = vld [vmem:[%s1857 + $0x8] sm:$0xff]
    %v1861 = vsel %vm1178, %v1855, 0
    %1863 = vmatprep.subr.mxu0 0.0
    %1864 = vmatpush1.msra.mxu0 %v1858
    %1865 = vmatprep.subr.mxu0 0.0
    %1866 = vmatpush1.msra.mxu0 %v1859
    %1867 = vmatprep.subr.mxu0 0.0
    %1868 = vmatpush1.msra.mxu0 0.0
    %1869 = vmatprep.subr.mxu0 0.0
    %1870 = vmatpush1.msra.mxu0 0.0
    %1871 = vmatprep.subr.mxu0 0.0
    %1872 = vmatpush1.msra.mxu0 0.0
    %1873 = vmatprep.subr.mxu0 0.0
    %1874 = vmatpush1.msra.mxu0 0.0
    %1875 = vmatprep.subr.mxu0 0.0
    %1876 = vmatpush1.msra.mxu0 0.0
    %1877 = vmatprep.subr.mxu0 0.0
    %1878 = vmatpush1.msra.mxu0 0.0
    %1879 = vmatprep.subr.mxu0 0.0
    %1880 = vmatpush1.msra.mxu0 0.0
    %1881 = vmatprep.subr.mxu0 0.0
    %1882 = vmatpush1.msra.mxu0 0.0
    %1883 = vmatprep.subr.mxu0 0.0
    %1884 = vmatpush1.msra.mxu0 0.0
    %1885 = vmatprep.subr.mxu0 0.0
    %1886 = vmatpush1.msra.mxu0 0.0
    %1887 = vmatprep.subr.mxu0 0.0
    %1888 = vmatpush1.msra.mxu0 0.0
    %1889 = vmatprep.subr.mxu0 0.0
    %1890 = vmatpush1.msra.mxu0 0.0
    %1891 = vmatprep.subr.mxu0 0.0
    %1892 = vmatpush1.msra.mxu0 0.0
    %1893 = vmatprep.subr.mxu0 0.0
    %1894 = vmatpush1.msra.mxu0 0.0
    %1895 = vmatprep.subr.mxu0 0.0
    %1896 = vmatpush1.msra.mxu0 0.0
    %1897 = vmatprep.subr.mxu0 0.0
    %1898 = vmatpush1.msra.mxu0 0.0
    %1899 = vmatprep.subr.mxu0 0.0
    %1900 = vmatpush1.msra.mxu0 0.0
    %1901 = vmatprep.subr.mxu0 0.0
    %1902 = vmatpush1.msra.mxu0 0.0
    %1903 = vmatprep.subr.mxu0 0.0
    %1904 = vmatpush1.msra.mxu0 0.0
    %1905 = vmatprep.subr.mxu0 0.0
    %1906 = vmatpush1.msra.mxu0 0.0
    %1907 = vmatprep.subr.mxu0 0.0
    %1908 = vmatpush1.msra.mxu0 0.0
    %1909 = vmatprep.subr.mxu0 0.0
    %1910 = vmatpush1.msra.mxu0 0.0
    %1911 = vmatprep.subr.mxu0 0.0
    %1912 = vmatpush1.msra.mxu0 0.0
    %1913 = vmatprep.subr.mxu0 0.0
    %1914 = vmatpush1.msra.mxu0 0.0
    %1915 = vmatprep.subr.mxu0 0.0
    %1916 = vmatpush1.msra.mxu0 0.0
    %1917 = vmatprep.subr.mxu0 0.0
    %1918 = vmatpush1.msra.mxu0 0.0
    %1919 = vmatprep.subr.mxu0 0.0
    %1920 = vmatpush1.msra.mxu0 0.0
    %1921 = vmatprep.subr.mxu0 0.0
    %1922 = vmatpush1.msra.mxu0 0.0
    %1923 = vmatprep.subr.mxu0 0.0
    %1924 = vmatpush1.msra.mxu0 0.0
    %1925 = vmatprep.subr.mxu0 0.0
    %1926 = vmatpush1.msra.mxu0 0.0
    %1927 = vmatprep.mubr.f32.mxu0 0.0
    %1928 = vmatmul.mubr.f32.gmra.mrb[0].mxu0 %v1861
    %v1929 = vpop.f32.mrb[0].mxu0
    %v1930 = vadd.f32 %v1173, %v1929
    %v1931 = vpop.f32.mrb[0].mxu0
    %1932 = vdwg.mxu0
    %s1933 = scalar_lea.vmem %s12, 2
    %v1934 = vld [vmem:[%s1933] sm:$0x1]
    %v1936 = vlaneseq
    %v1937 = vshrl.u32 %v1936, 7
    %v1938 = vsub.s32 0, %v1937
    %v1939 = vrot.slane %v1934, %v1938
    %v1941 = vadd.f32 %v1930, %v1939
    %v1942 = vmax.f32 %v1941, 0.0
    %s1943 = scalar_lea.vmem %s13, 64
    %v1944 = vld [vmem:[%s1943] sm:$0xff]
    %v1945 = vld [vmem:[%s1943 + $0x8] sm:$0xff]
    %v1946 = vld [vmem:[%s1943 + $0x10] sm:$0xff]
    %v1947 = vld [vmem:[%s1943 + $0x18] sm:$0xff]
    %s1948 = scalar_lea.vmem %s14, 2
    %v1949 = vld [vmem:[%s1948] sm:$0x1]
    %v1951 = vlaneseq
    %v1952 = vshrl.u32 %v1951, 7
    %v1953 = vsub.s32 0, %v1952
    %v1954 = vrot.slane %v1949, %v1953
    %v1957 = vsel %vm364, %v1942, 0
    %1959 = vmatprep.subr.mxu0 0.0
    %1960 = vmatpush1.msra.mxu0 %v1944
    %1961 = vmatprep.subr.mxu0 0.0
    %1962 = vmatpush1.msra.mxu0 %v1945
    %1963 = vmatprep.subr.mxu0 0.0
    %1964 = vmatpush1.msra.mxu0 %v1946
    %1965 = vmatprep.subr.mxu0 0.0
    %1966 = vmatpush1.msra.mxu0 %v1947
    %1967 = vmatprep.subr.mxu0 0.0
    %1968 = vmatpush1.msra.mxu0 0.0
    %1969 = vmatprep.subr.mxu0 0.0
    %1970 = vmatpush1.msra.mxu0 0.0
    %1971 = vmatprep.subr.mxu0 0.0
    %1972 = vmatpush1.msra.mxu0 0.0
    %1973 = vmatprep.subr.mxu0 0.0
    %1974 = vmatpush1.msra.mxu0 0.0
    %1975 = vmatprep.subr.mxu0 0.0
    %1976 = vmatpush1.msra.mxu0 0.0
    %1977 = vmatprep.subr.mxu0 0.0
    %1978 = vmatpush1.msra.mxu0 0.0
    %1979 = vmatprep.subr.mxu0 0.0
    %1980 = vmatpush1.msra.mxu0 0.0
    %1981 = vmatprep.subr.mxu0 0.0
    %1982 = vmatpush1.msra.mxu0 0.0
    %1983 = vmatprep.subr.mxu0 0.0
    %1984 = vmatpush1.msra.mxu0 0.0
    %1985 = vmatprep.subr.mxu0 0.0
    %1986 = vmatpush1.msra.mxu0 0.0
    %1987 = vmatprep.subr.mxu0 0.0
    %1988 = vmatpush1.msra.mxu0 0.0
    %1989 = vmatprep.subr.mxu0 0.0
    %1990 = vmatpush1.msra.mxu0 0.0
    %1991 = vmatprep.subr.mxu0 0.0
    %1992 = vmatpush1.msra.mxu0 0.0
    %1993 = vmatprep.subr.mxu0 0.0
    %1994 = vmatpush1.msra.mxu0 0.0
    %1995 = vmatprep.subr.mxu0 0.0
    %1996 = vmatpush1.msra.mxu0 0.0
    %1997 = vmatprep.subr.mxu0 0.0
    %1998 = vmatpush1.msra.mxu0 0.0
    %1999 = vmatprep.subr.mxu0 0.0
    %2000 = vmatpush1.msra.mxu0 0.0
    %2001 = vmatprep.subr.mxu0 0.0
    %2002 = vmatpush1.msra.mxu0 0.0
    %2003 = vmatprep.subr.mxu0 0.0
    %2004 = vmatpush1.msra.mxu0 0.0
    %2005 = vmatprep.subr.mxu0 0.0
    %2006 = vmatpush1.msra.mxu0 0.0
    %2007 = vmatprep.subr.mxu0 0.0
    %2008 = vmatpush1.msra.mxu0 0.0
    %2009 = vmatprep.subr.mxu0 0.0
    %2010 = vmatpush1.msra.mxu0 0.0
    %2011 = vmatprep.subr.mxu0 0.0
    %2012 = vmatpush1.msra.mxu0 0.0
    %2013 = vmatprep.subr.mxu0 0.0
    %2014 = vmatpush1.msra.mxu0 0.0
    %2015 = vmatprep.subr.mxu0 0.0
    %2016 = vmatpush1.msra.mxu0 0.0
    %2017 = vmatprep.subr.mxu0 0.0
    %2018 = vmatpush1.msra.mxu0 0.0
    %2019 = vmatprep.subr.mxu0 0.0
    %2020 = vmatpush1.msra.mxu0 0.0
    %2021 = vmatprep.subr.mxu0 0.0
    %2022 = vmatpush1.msra.mxu0 0.0
    %2023 = vmatprep.mubr.f32.mxu0 0.0
    %2024 = vmatmul.mubr.f32.gmra.mrb[0].mxu0 %v1957
    %v2025 = vpop.f32.mrb[0].mxu0
    %v2026 = vadd.f32 %v1954, %v2025
    %v2027 = vpop.f32.mrb[0].mxu0
    %2028 = vdwg.mxu0
    %v2029 = vmax.f32 %v2026, 0.0
    %s2030 = scalar_lea.vmem %s15, 64
    %v2031 = vld [vmem:[%s2030] sm:$0xff]
    %v2032 = vld [vmem:[%s2030 + $0x8] sm:$0xff]
    %v2033 = vld [vmem:[%s2030 + $0x10] sm:$0xff]
    %v2034 = vld [vmem:[%s2030 + $0x18] sm:$0xff]
    %s2035 = scalar_lea.vmem %s16, 2
    %v2036 = vld [vmem:[%s2035] sm:$0x1]
    %v2038 = vlaneseq
    %v2039 = vshrl.u32 %v2038, 7
    %v2040 = vsub.s32 0, %v2039
    %v2041 = vrot.slane %v2036, %v2040
    %v2044 = vsel %vm364, %v2029, 0
    %2046 = vmatprep.subr.mxu0 0.0
    %2047 = vmatpush1.msra.mxu0 %v2031
    %2048 = vmatprep.subr.mxu0 0.0
    %2049 = vmatpush1.msra.mxu0 %v2032
    %2050 = vmatprep.subr.mxu0 0.0
    %2051 = vmatpush1.msra.mxu0 %v2033
    %2052 = vmatprep.subr.mxu0 0.0
    %2053 = vmatpush1.msra.mxu0 %v2034
    %2054 = vmatprep.subr.mxu0 0.0
    %2055 = vmatpush1.msra.mxu0 0.0
    %2056 = vmatprep.subr.mxu0 0.0
    %2057 = vmatpush1.msra.mxu0 0.0
    %2058 = vmatprep.subr.mxu0 0.0
    %2059 = vmatpush1.msra.mxu0 0.0
    %2060 = vmatprep.subr.mxu0 0.0
    %2061 = vmatpush1.msra.mxu0 0.0
    %2062 = vmatprep.subr.mxu0 0.0
    %2063 = vmatpush1.msra.mxu0 0.0
    %2064 = vmatprep.subr.mxu0 0.0
    %2065 = vmatpush1.msra.mxu0 0.0
    %2066 = vmatprep.subr.mxu0 0.0
    %2067 = vmatpush1.msra.mxu0 0.0
    %2068 = vmatprep.subr.mxu0 0.0
    %2069 = vmatpush1.msra.mxu0 0.0
    %2070 = vmatprep.subr.mxu0 0.0
    %2071 = vmatpush1.msra.mxu0 0.0
    %2072 = vmatprep.subr.mxu0 0.0
    %2073 = vmatpush1.msra.mxu0 0.0
    %2074 = vmatprep.subr.mxu0 0.0
    %2075 = vmatpush1.msra.mxu0 0.0
    %2076 = vmatprep.subr.mxu0 0.0
    %2077 = vmatpush1.msra.mxu0 0.0
    %2078 = vmatprep.subr.mxu0 0.0
    %2079 = vmatpush1.msra.mxu0 0.0
    %2080 = vmatprep.subr.mxu0 0.0
    %2081 = vmatpush1.msra.mxu0 0.0
    %2082 = vmatprep.subr.mxu0 0.0
    %2083 = vmatpush1.msra.mxu0 0.0
    %2084 = vmatprep.subr.mxu0 0.0
    %2085 = vmatpush1.msra.mxu0 0.0
    %2086 = vmatprep.subr.mxu0 0.0
    %2087 = vmatpush1.msra.mxu0 0.0
    %2088 = vmatprep.subr.mxu0 0.0
    %2089 = vmatpush1.msra.mxu0 0.0
    %2090 = vmatprep.subr.mxu0 0.0
    %2091 = vmatpush1.msra.mxu0 0.0
    %2092 = vmatprep.subr.mxu0 0.0
    %2093 = vmatpush1.msra.mxu0 0.0
    %2094 = vmatprep.subr.mxu0 0.0
    %2095 = vmatpush1.msra.mxu0 0.0
    %2096 = vmatprep.subr.mxu0 0.0
    %2097 = vmatpush1.msra.mxu0 0.0
    %2098 = vmatprep.subr.mxu0 0.0
    %2099 = vmatpush1.msra.mxu0 0.0
    %2100 = vmatprep.subr.mxu0 0.0
    %2101 = vmatpush1.msra.mxu0 0.0
    %2102 = vmatprep.subr.mxu0 0.0
    %2103 = vmatpush1.msra.mxu0 0.0
    %2104 = vmatprep.subr.mxu0 0.0
    %2105 = vmatpush1.msra.mxu0 0.0
    %2106 = vmatprep.subr.mxu0 0.0
    %2107 = vmatpush1.msra.mxu0 0.0
    %2108 = vmatprep.subr.mxu0 0.0
    %2109 = vmatpush1.msra.mxu0 0.0
    %2110 = vmatprep.mubr.f32.mxu0 0.0
    %2111 = vmatmul.mubr.f32.gmra.mrb[0].mxu0 %v2044
    %v2112 = vpop.f32.mrb[0].mxu0
    %v2113 = vadd.f32 %v2041, %v2112
    %v2114 = vpop.f32.mrb[0].mxu0
    %2115 = vdwg.mxu0
    %s2116 = scalar_lea.vmem %s17, 64
    %v2117 = vld [vmem:[%s2116] sm:$0xff]
    %v2118 = vld [vmem:[%s2116 + $0x8] sm:$0xff]
    %v2119 = vld [vmem:[%s2116 + $0x10] sm:$0xff]
    %v2120 = vld [vmem:[%s2116 + $0x18] sm:$0xff]
    %s2121 = scalar_lea.vmem %s18, 2
    %v2122 = vld [vmem:[%s2121] sm:$0x1]
    %v2124 = vlaneseq
    %v2125 = vshrl.u32 %v2124, 7
    %v2126 = vsub.s32 0, %v2125
    %v2127 = vrot.slane %v2122, %v2126
    %2129 = vmatprep.subr.mxu0 0.0
    %2130 = vmatpush1.msra.mxu0 %v2117
    %2131 = vmatprep.subr.mxu0 0.0
    %2132 = vmatpush1.msra.mxu0 %v2118
    %2133 = vmatprep.subr.mxu0 0.0
    %2134 = vmatpush1.msra.mxu0 %v2119
    %2135 = vmatprep.subr.mxu0 0.0
    %2136 = vmatpush1.msra.mxu0 %v2120
    %2137 = vmatprep.subr.mxu0 0.0
    %2138 = vmatpush1.msra.mxu0 0.0
    %2139 = vmatprep.subr.mxu0 0.0
    %2140 = vmatpush1.msra.mxu0 0.0
    %2141 = vmatprep.subr.mxu0 0.0
    %2142 = vmatpush1.msra.mxu0 0.0
    %2143 = vmatprep.subr.mxu0 0.0
    %2144 = vmatpush1.msra.mxu0 0.0
    %2145 = vmatprep.subr.mxu0 0.0
    %2146 = vmatpush1.msra.mxu0 0.0
    %2147 = vmatprep.subr.mxu0 0.0
    %2148 = vmatpush1.msra.mxu0 0.0
    %2149 = vmatprep.subr.mxu0 0.0
    %2150 = vmatpush1.msra.mxu0 0.0
    %2151 = vmatprep.subr.mxu0 0.0
    %2152 = vmatpush1.msra.mxu0 0.0
    %2153 = vmatprep.subr.mxu0 0.0
    %2154 = vmatpush1.msra.mxu0 0.0
    %2155 = vmatprep.subr.mxu0 0.0
    %2156 = vmatpush1.msra.mxu0 0.0
    %2157 = vmatprep.subr.mxu0 0.0
    %2158 = vmatpush1.msra.mxu0 0.0
    %2159 = vmatprep.subr.mxu0 0.0
    %2160 = vmatpush1.msra.mxu0 0.0
    %2161 = vmatprep.subr.mxu0 0.0
    %2162 = vmatpush1.msra.mxu0 0.0
    %2163 = vmatprep.subr.mxu0 0.0
    %2164 = vmatpush1.msra.mxu0 0.0
    %2165 = vmatprep.subr.mxu0 0.0
    %2166 = vmatpush1.msra.mxu0 0.0
    %2167 = vmatprep.subr.mxu0 0.0
    %2168 = vmatpush1.msra.mxu0 0.0
    %2169 = vmatprep.subr.mxu0 0.0
    %2170 = vmatpush1.msra.mxu0 0.0
    %2171 = vmatprep.subr.mxu0 0.0
    %2172 = vmatpush1.msra.mxu0 0.0
    %2173 = vmatprep.subr.mxu0 0.0
    %2174 = vmatpush1.msra.mxu0 0.0
    %2175 = vmatprep.subr.mxu0 0.0
    %2176 = vmatpush1.msra.mxu0 0.0
    %2177 = vmatprep.subr.mxu0 0.0
    %2178 = vmatpush1.msra.mxu0 0.0
    %2179 = vmatprep.subr.mxu0 0.0
    %2180 = vmatpush1.msra.mxu0 0.0
    %2181 = vmatprep.subr.mxu0 0.0
    %2182 = vmatpush1.msra.mxu0 0.0
    %2183 = vmatprep.subr.mxu0 0.0
    %2184 = vmatpush1.msra.mxu0 0.0
    %2185 = vmatprep.subr.mxu0 0.0
    %2186 = vmatpush1.msra.mxu0 0.0
    %2187 = vmatprep.subr.mxu0 0.0
    %2188 = vmatpush1.msra.mxu0 0.0
    %2189 = vmatprep.subr.mxu0 0.0
    %2190 = vmatpush1.msra.mxu0 0.0
    %2191 = vmatprep.subr.mxu0 0.0
    %2192 = vmatpush1.msra.mxu0 0.0
    %2193 = vmatprep.mubr.f32.mxu0 0.0
    %2194 = vmatmul.mubr.f32.gmra.mrb[0].mxu0 %v2044
    %v2195 = vpop.f32.mrb[0].mxu0
    %v2196 = vadd.f32 %v2127, %v2195
    %v2197 = vpop.f32.mrb[0].mxu0
    %2198 = vdwg.mxu0
    %v2199 = vsub.f32 %v1855, %v2113
    %v2200 = vadd.f32 %v1856, %v2196
    %2202 = vrot.lane.b32.xlu0 %v2200, 16
    %v2203 = vpop.permute.xlu0 %2202
    %v2205 = vsel %vm1178, %v2199, %v2203
    %vm2206 = vcmask 195584
    %2207 = vst.msk [vmem:[#allocation2] sm:$0xff] %vm2206, %v2205
    // Predicated region
    $region78: #{tpu_custom_call.1} parent=1 // pred_check
      _
    $region79: #{tpu_custom_call.1} parent=1 // pred_check_branch
      %2209 = sbr.rel (0) target = $region81
    $region80: #{tpu_custom_call.1} parent=1 // pred_region
      %s2211 = ssub.s32 128, 128
      %2212 = vsyncadd [#allocation3], %s2211
      %s2214 = sshll.u32 [#allocation2], 4
      %s2215 = int_to_ptr.vmem [resolvable:$true] %s2214
      %2217 = dma.vmem_to_hbm [thread:$0]  %s2215, 128, %s19, [#allocation3]
    $region81: #{tpu_custom_call.1} parent=1 // pred_fallthru
      _
    // Predicated region
    $region82: #{tpu_custom_call.1} parent=1 // pred_check
      _
    $region83: #{tpu_custom_call.1} parent=1 // pred_check_branch
      %2219 = sbr.rel (0) target = $region85
    $region84: #{tpu_custom_call.1} parent=1 // pred_region
      %2220 = dma.done [#allocation3], 128
    $region85: #{tpu_custom_call.1} parent=1 // pred_fallthru
      _
    %2221 = vsyncpa [#allocation3], 1

</llo_original>
